<compile_context>
chip_gen: v5e
topology: v5e:2x2
jax: 0.10.0
libtpu: 0.0.40
codegen_flags: <defaults>
</compile_context>

<pallas_src>
import numpy as np
import jax
import jax.numpy as jnp
from jax import lax
from jax.experimental import pallas as pl
from jax.experimental.pallas import tpu as pltpu

F32 = jnp.float32


# ---------------------------------------------------------------------------
# Fused forward kernel (one program per image)
# ---------------------------------------------------------------------------
def _fused_forward_kernel(cols1_ref, w1_ref, b1_ref, w2_ref, b2_ref,
                          wf1_ref, bf1_ref, wf2_ref, bf2_ref, wf3_ref, bf3_ref,
                          out_ref, conv1_scr):
    # ---- Conv2d(3->32, k=3): one MXU matmul over the [196, 27] patch matrix
    h1 = jnp.dot(cols1_ref[0], w1_ref[...], preferred_element_type=F32)
    h1 = h1 + b1_ref[...]                                   # [196, 32], rows=(h,w)

    # Stash as an (h, w, c) spatial tile in VMEM scratch so pooling can use
    # strided window reads.  Activation stays on-chip; never written to HBM.
    for h in range(14):
        conv1_scr[h] = h1[14 * h:14 * (h + 1), :]

    # ---- MaxPool2d(2,2) then ReLU (PyTorch order; pool/ReLU commute) ----
    w_even = conv1_scr[:, pl.ds(0, 7, 2), :]                # [14, 7, 32]  w even
    w_odd = conv1_scr[:, pl.ds(1, 7, 2), :]                 # [14, 7, 32]  w odd
    wmax = jnp.maximum(w_even, w_odd)
    p1_rows = [jnp.maximum(jnp.maximum(wmax[2 * ho], wmax[2 * ho + 1]), 0.0)
               for ho in range(7)]                          # 7 x [7(w), 32(c)]
    # TODO(synk): Dropout(p=0.3) is inference-mode identity; training-mode
    # Bernoulli masking not implemented.

    # ---- Conv2d(32->64, k=3) via in-kernel im2col (static slices + concat) ----
    lhs_rows = []
    for ho in range(5):
        taps = [p1_rows[ho + i][j:j + 5, :]                 # [5, 32] each
                for i in range(3) for j in range(3)]        # (i, j, c) order = HWIO
        lhs_rows.append(jnp.concatenate(taps, axis=1))      # [5, 288]
    lhs2 = jnp.concatenate(lhs_rows, axis=0)                # [25, 288], rows=(ho,wo)
    h2 = jnp.dot(lhs2, w2_ref[...], preferred_element_type=F32) + b2_ref[...]
    h2 = jnp.maximum(h2, 0.0)                               # ReLU, [25, 64]
    # (Dropout: identity in inference mode.)

    # ---- MaxPool2d(2,2) floor (5x5 -> 2x2) + NHWC flatten ----
    pooled = []
    for po in range(2):
        for qo in range(2):
            r = 10 * po + 2 * qo                            # row = ho*5 + wo
            m = jnp.maximum(
                jnp.maximum(h2[r:r + 1, :], h2[r + 1:r + 2, :]),
                jnp.maximum(h2[r + 5:r + 6, :], h2[r + 6:r + 7, :]))
            pooled.append(m)                                # [1, 64]
    feat = jnp.concatenate(pooled, axis=1)                  # [1, 256] in (po,qo,c)
    # (wf1 rows were pre-permuted so this NHWC order matches PyTorch's
    #  NCHW flatten -- no transpose needed.)

    # ---- FC head 256 -> 64 -> 32 -> classes ----
    h = jnp.dot(feat, wf1_ref[...], preferred_element_type=F32) + bf1_ref[...]
    h = jnp.maximum(h, 0.0)
    h = jnp.dot(h, wf2_ref[...], preferred_element_type=F32) + bf2_ref[...]
    h = jnp.maximum(h, 0.0)
    logits = jnp.dot(h, wf3_ref[...], preferred_element_type=F32) + bf3_ref[...]
    out_ref[0] = logits.astype(out_ref.dtype)               # [1, n_classes]


# ---------------------------------------------------------------------------
# Wrapper: boundary layout plumbing + single pallas_call
# ---------------------------------------------------------------------------
def custom_nn_forward(x_nchw, kp):
    B, C, H, W = x_nchw.shape
    assert (C, H, W) == (3, 16, 16), "spatial size fixed by the Linear(256) head"
    n_classes = kp["wf3"].shape[1]

    # Input-path layout plumbing only: NCHW -> NHWC, then im2col of the raw
    # image into a dense [B, 196, 27] patch matrix (tap-major, channel-minor,
    # matching w1 = HWIO.reshape(27, 32)).  XLA fuses this into the input feed.
    x = jnp.transpose(x_nchw, (0, 2, 3, 1)).astype(F32)
    taps = [x[:, i:i + 14, j:j + 14, :] for i in range(3) for j in range(3)]
    cols1 = jnp.concatenate(taps, axis=-1).reshape(B, 196, 27)

    flops = B * (2 * 196 * 27 * 32 + 2 * 25 * 288 * 64
                 + 2 * (256 * 64 + 64 * 32 + 32 * n_classes))
    bytes_accessed = (B * 196 * 27 + 27 * 32 + 32 + 288 * 64 + 64 + 256 * 64
                      + 64 + 64 * 32 + 32 + 32 * n_classes + n_classes
                      + B * n_classes) * 4

    const2 = lambda b: (0, 0)
    out = pl.pallas_call(
        _fused_forward_kernel,
        out_shape=jax.ShapeDtypeStruct((B, 1, n_classes), F32),
        grid=(B,),
        in_specs=[
            pl.BlockSpec((1, 196, 27), lambda b: (b, 0, 0)),   # image patches
            pl.BlockSpec((27, 32), const2),                    # w1
            pl.BlockSpec((1, 32), const2),                     # b1
            pl.BlockSpec((288, 64), const2),                   # w2
            pl.BlockSpec((1, 64), const2),                     # b2
            pl.BlockSpec((256, 64), const2),                   # wf1 (permuted)
            pl.BlockSpec((1, 64), const2),                     # bf1
            pl.BlockSpec((64, 32), const2),                    # wf2
            pl.BlockSpec((1, 32), const2),                     # bf2
            pl.BlockSpec((32, n_classes), const2),             # wf3
            pl.BlockSpec((1, n_classes), const2),              # bf3
        ],
        out_specs=pl.BlockSpec((1, 1, n_classes), lambda b: (b, 0, 0)),
        scratch_shapes=[pltpu.VMEM((14, 14, 32), F32)],        # conv1 activation
        compiler_params=pltpu.CompilerParams(
            dimension_semantics=("parallel",)),                # 2 TCs on v7x
        cost_estimate=pl.CostEstimate(flops=flops, transcendentals=0,
                                      bytes_accessed=bytes_accessed),
    )(cols1, kp["w1"], kp["b1"], kp["w2"], kp["b2"],
      kp["wf1"], kp["bf1"], kp["wf2"], kp["bf2"], kp["wf3"], kp["bf3"])
    return out[:, 0, :]


# ---------------------------------------------------------------------------
# Parameter init (PyTorch-equivalent shapes) and kernel-ready prep
# ---------------------------------------------------------------------------
def init_params(key):
    ks = jax.random.split(key, 10)
    return {
        "w1":  0.10 * jax.random.normal(ks[0], (3, 3, 3, 32), F32),    # HWIO
        "b1":  0.05 * jax.random.normal(ks[1], (32,), F32),
        "w2":  0.05 * jax.random.normal(ks[2], (3, 3, 32, 64), F32),   # HWIO
        "b2":  0.05 * jax.random.normal(ks[3], (64,), F32),
        "wf1": 0.05 * jax.random.normal(ks[4], (256, 64), F32),        # torch (C,H,W) rows
        "bf1": 0.05 * jax.random.normal(ks[5], (64,), F32),
        "wf2": 0.10 * jax.random.normal(ks[6], (64, 32), F32),
        "bf2": 0.05 * jax.random.normal(ks[7], (32,), F32),
        "wf3": 0.10 * jax.random.normal(ks[8], (32, 3), F32),
        "bf3": 0.05 * jax.random.normal(ks[9], (3,), F32),
    }


def prepare_params(p):
    """One-time prep (outside jit): flatten conv weights to GEMM form and fold
    the NCHW-flatten permutation into wf1 so the kernel never transposes."""
    idx = np.arange(256)
    perm = (idx % 64) * 4 + (idx // 64)   # NHWC row (po,qo,c) -> torch row (c,po,qo)
    return {
        "w1":  p["w1"].reshape(27, 32),
        "b1":  p["b1"].reshape(1, 32),
        "w2":  p["w2"].reshape(288, 64),
        "b2":  p["b2"].reshape(1, 64),
        "wf1": p["wf1"][perm],
        "bf1": p["bf1"].reshape(1, 64),
        "wf2": p["wf2"],
        "bf2": p["bf2"].reshape(1, 32),
        "wf3": p["wf3"],
        "bf3": p["bf3"].reshape(1, -1),
    }


# ---------------------------------------------------------------------------
# Pure-JAX reference (mirrors PyTorch semantics) for a correctness check
# ---------------------------------------------------------------------------
def reference_forward(x_nchw, p):
    x = jnp.transpose(x_nchw, (0, 2, 3, 1)).astype(F32)
    dn = ("NHWC", "HWIO", "NHWC")
    y = lax.conv_general_dilated(x, p["w1"], (1, 1), "VALID", dimension_numbers=dn) + p["b1"]
    y = lax.reduce_window(y, -jnp.inf, lax.max, (1, 2, 2, 1), (1, 2, 2, 1), "VALID")
    y = jnp.maximum(y, 0.0)
    y = lax.conv_general_dilated(y, p["w2"], (1, 1), "VALID", dimension_numbers=dn) + p["b2"]
    y = jnp.maximum(y, 0.0)
    y = lax.reduce_window(y, -jnp.inf, lax.max, (1, 2, 2, 1), (1, 2, 2, 1), "VALID")
    flat = jnp.transpose(y, (0, 3, 1, 2)).reshape(y.shape[0], -1)   # NCHW flatten
    h = jnp.maximum(flat @ p["wf1"] + p["bf1"], 0.0)
    h = jnp.maximum(h @ p["wf2"] + p["bf2"], 0.0)
    return h @ p["wf3"] + p["bf3"]


if __name__ == "__main__":
    key = jax.random.PRNGKey(0)
    pkey, xkey = jax.random.split(key)
    params = init_params(pkey)
    kparams = prepare_params(params)   # one-time, outside jit

    # Input like the PyTorch module expects: NCHW, 3 channels, 16x16 spatial
    # (16x16 is the spatial size implied by the 256-unit Linear after flatten).
    x = jax.random.normal(xkey, (2, 3, 16, 16), F32)

    out = jax.jit(custom_nn_forward)(x, kparams)
    out = jax.block_until_ready(out)
    assert out.shape == (2, 3) and out.dtype == jnp.float32

    ref = reference_forward(x, params)
    np.testing.assert_allclose(np.asarray(out), np.asarray(ref), rtol=2e-2, atol=2e-2)

    print("KERNEL_OK")
</pallas_src>

<mosaic_0001>
module attributes {stable_mosaic.version = 11 : i64} {
  func.func @_fused_forward_kernel(%arg0: i32, %arg1: memref<1x196x27xf32, #tpu.memory_space<vmem>>, %arg2: memref<27x32xf32, #tpu.memory_space<vmem>>, %arg3: memref<1x32xf32, #tpu.memory_space<vmem>>, %arg4: memref<288x64xf32, #tpu.memory_space<vmem>>, %arg5: memref<1x64xf32, #tpu.memory_space<vmem>>, %arg6: memref<256x64xf32, #tpu.memory_space<vmem>>, %arg7: memref<1x64xf32, #tpu.memory_space<vmem>>, %arg8: memref<64x32xf32, #tpu.memory_space<vmem>>, %arg9: memref<1x32xf32, #tpu.memory_space<vmem>>, %arg10: memref<32x3xf32, #tpu.memory_space<vmem>>, %arg11: memref<1x3xf32, #tpu.memory_space<vmem>>, %arg12: memref<1x1x3xf32, #tpu.memory_space<vmem>>, %arg13: memref<14x14x32xf32, #tpu.memory_space<vmem>>) attributes {dimension_semantics = [#tpu.dimension_semantics<parallel>], iteration_bounds = array<i64: 2>, scalar_prefetch = 0 : i64, scratch_operands = 1 : i64, tpu.core_type = #tpu.core_type<tc>, window_params = [{transform_indices = @transform_0, window_bounds = array<i64: 1, 196, 27>}, {pipeline_mode = #tpu.pipeline_mode<synchronous>, transform_indices = @transform_1, window_bounds = array<i64: 27, 32>}, {pipeline_mode = #tpu.pipeline_mode<synchronous>, transform_indices = @transform_2, window_bounds = array<i64: 1, 32>}, {pipeline_mode = #tpu.pipeline_mode<synchronous>, transform_indices = @transform_3, window_bounds = array<i64: 288, 64>}, {pipeline_mode = #tpu.pipeline_mode<synchronous>, transform_indices = @transform_4, window_bounds = array<i64: 1, 64>}, {pipeline_mode = #tpu.pipeline_mode<synchronous>, transform_indices = @transform_5, window_bounds = array<i64: 256, 64>}, {pipeline_mode = #tpu.pipeline_mode<synchronous>, transform_indices = @transform_6, window_bounds = array<i64: 1, 64>}, {pipeline_mode = #tpu.pipeline_mode<synchronous>, transform_indices = @transform_7, window_bounds = array<i64: 64, 32>}, {pipeline_mode = #tpu.pipeline_mode<synchronous>, transform_indices = @transform_8, window_bounds = array<i64: 1, 32>}, {pipeline_mode = #tpu.pipeline_mode<synchronous>, transform_indices = @transform_9, window_bounds = array<i64: 32, 3>}, {pipeline_mode = #tpu.pipeline_mode<synchronous>, transform_indices = @transform_10, window_bounds = array<i64: 1, 3>}, {transform_indices = @transform_11, window_bounds = array<i64: 1, 1, 3>}]} {
    %c0 = arith.constant 0 : index
    %c0_0 = arith.constant 0 : index
    %c0_1 = arith.constant 0 : index
    %0 = vector.load %arg1[%c0, %c0_0, %c0_1] : memref<1x196x27xf32, #tpu.memory_space<vmem>>, vector<1x196x27xf32>
    %1 = vector.shape_cast %0 : vector<1x196x27xf32> to vector<196x27xf32>
    %c0_2 = arith.constant 0 : index
    %c0_3 = arith.constant 0 : index
    %2 = vector.load %arg2[%c0_2, %c0_3] : memref<27x32xf32, #tpu.memory_space<vmem>>, vector<27x32xf32>
    %cst = arith.constant dense<0.000000e+00> : vector<196x32xf32>
    %3 = tpu.matmul %1, %2, %cst {dimension_numbers = #tpu.dot_dimension_numbers<[1], [0], [0], [1], [0, 0, 1, 1], [], []>} : vector<196x27xf32>, vector<27x32xf32>, vector<196x32xf32> -> vector<196x32xf32>
    %c0_4 = arith.constant 0 : index
    %c0_5 = arith.constant 0 : index
    %4 = vector.load %arg3[%c0_4, %c0_5] : memref<1x32xf32, #tpu.memory_space<vmem>>, vector<1x32xf32>
    %5 = vector.broadcast %4 : vector<1x32xf32> to vector<196x32xf32>
    %6 = arith.addf %3, %5 : vector<196x32xf32>
    %7 = vector.extract_strided_slice %6 {offsets = [0, 0], sizes = [14, 32], strides = [1, 1]} : vector<196x32xf32> to vector<14x32xf32>
    %c0_6 = arith.constant 0 : index
    %c0_7 = arith.constant 0 : index
    %c0_8 = arith.constant 0 : index
    %8 = vector.load %arg13[%c0_6, %c0_7, %c0_8] : memref<14x14x32xf32, #tpu.memory_space<vmem>>, vector<1x14x32xf32>
    %9 = vector.shape_cast %8 : vector<1x14x32xf32> to vector<14x32xf32>
    %10 = vector.shape_cast %7 : vector<14x32xf32> to vector<1x14x32xf32>
    tpu.vector_store %arg13[%c0_6, %c0_7, %c0_8], %10 {strides = array<i32>} : memref<14x14x32xf32, #tpu.memory_space<vmem>>, vector<1x14x32xf32>,
    %11 = vector.extract_strided_slice %6 {offsets = [14, 0], sizes = [14, 32], strides = [1, 1]} : vector<196x32xf32> to vector<14x32xf32>
    %c1 = arith.constant 1 : index
    %c0_9 = arith.constant 0 : index
    %c0_10 = arith.constant 0 : index
    %12 = vector.load %arg13[%c1, %c0_9, %c0_10] : memref<14x14x32xf32, #tpu.memory_space<vmem>>, vector<1x14x32xf32>
    %13 = vector.shape_cast %12 : vector<1x14x32xf32> to vector<14x32xf32>
    %14 = vector.shape_cast %11 : vector<14x32xf32> to vector<1x14x32xf32>
    tpu.vector_store %arg13[%c1, %c0_9, %c0_10], %14 {strides = array<i32>} : memref<14x14x32xf32, #tpu.memory_space<vmem>>, vector<1x14x32xf32>,
    %15 = vector.extract_strided_slice %6 {offsets = [28, 0], sizes = [14, 32], strides = [1, 1]} : vector<196x32xf32> to vector<14x32xf32>
    %c2 = arith.constant 2 : index
    %c0_11 = arith.constant 0 : index
    %c0_12 = arith.constant 0 : index
    %16 = vector.load %arg13[%c2, %c0_11, %c0_12] : memref<14x14x32xf32, #tpu.memory_space<vmem>>, vector<1x14x32xf32>
    %17 = vector.shape_cast %16 : vector<1x14x32xf32> to vector<14x32xf32>
    %18 = vector.shape_cast %15 : vector<14x32xf32> to vector<1x14x32xf32>
    tpu.vector_store %arg13[%c2, %c0_11, %c0_12], %18 {strides = array<i32>} : memref<14x14x32xf32, #tpu.memory_space<vmem>>, vector<1x14x32xf32>,
    %19 = vector.extract_strided_slice %6 {offsets = [42, 0], sizes = [14, 32], strides = [1, 1]} : vector<196x32xf32> to vector<14x32xf32>
    %c3 = arith.constant 3 : index
    %c0_13 = arith.constant 0 : index
    %c0_14 = arith.constant 0 : index
    %20 = vector.load %arg13[%c3, %c0_13, %c0_14] : memref<14x14x32xf32, #tpu.memory_space<vmem>>, vector<1x14x32xf32>
    %21 = vector.shape_cast %20 : vector<1x14x32xf32> to vector<14x32xf32>
    %22 = vector.shape_cast %19 : vector<14x32xf32> to vector<1x14x32xf32>
    tpu.vector_store %arg13[%c3, %c0_13, %c0_14], %22 {strides = array<i32>} : memref<14x14x32xf32, #tpu.memory_space<vmem>>, vector<1x14x32xf32>,
    %23 = vector.extract_strided_slice %6 {offsets = [56, 0], sizes = [14, 32], strides = [1, 1]} : vector<196x32xf32> to vector<14x32xf32>
    %c4 = arith.constant 4 : index
    %c0_15 = arith.constant 0 : index
    %c0_16 = arith.constant 0 : index
    %24 = vector.load %arg13[%c4, %c0_15, %c0_16] : memref<14x14x32xf32, #tpu.memory_space<vmem>>, vector<1x14x32xf32>
    %25 = vector.shape_cast %24 : vector<1x14x32xf32> to vector<14x32xf32>
    %26 = vector.shape_cast %23 : vector<14x32xf32> to vector<1x14x32xf32>
    tpu.vector_store %arg13[%c4, %c0_15, %c0_16], %26 {strides = array<i32>} : memref<14x14x32xf32, #tpu.memory_space<vmem>>, vector<1x14x32xf32>,
    %27 = vector.extract_strided_slice %6 {offsets = [70, 0], sizes = [14, 32], strides = [1, 1]} : vector<196x32xf32> to vector<14x32xf32>
    %c5 = arith.constant 5 : index
    %c0_17 = arith.constant 0 : index
    %c0_18 = arith.constant 0 : index
    %28 = vector.load %arg13[%c5, %c0_17, %c0_18] : memref<14x14x32xf32, #tpu.memory_space<vmem>>, vector<1x14x32xf32>
    %29 = vector.shape_cast %28 : vector<1x14x32xf32> to vector<14x32xf32>
    %30 = vector.shape_cast %27 : vector<14x32xf32> to vector<1x14x32xf32>
    tpu.vector_store %arg13[%c5, %c0_17, %c0_18], %30 {strides = array<i32>} : memref<14x14x32xf32, #tpu.memory_space<vmem>>, vector<1x14x32xf32>,
    %31 = vector.extract_strided_slice %6 {offsets = [84, 0], sizes = [14, 32], strides = [1, 1]} : vector<196x32xf32> to vector<14x32xf32>
    %c6 = arith.constant 6 : index
    %c0_19 = arith.constant 0 : index
    %c0_20 = arith.constant 0 : index
    %32 = vector.load %arg13[%c6, %c0_19, %c0_20] : memref<14x14x32xf32, #tpu.memory_space<vmem>>, vector<1x14x32xf32>
    %33 = vector.shape_cast %32 : vector<1x14x32xf32> to vector<14x32xf32>
    %34 = vector.shape_cast %31 : vector<14x32xf32> to vector<1x14x32xf32>
    tpu.vector_store %arg13[%c6, %c0_19, %c0_20], %34 {strides = array<i32>} : memref<14x14x32xf32, #tpu.memory_space<vmem>>, vector<1x14x32xf32>,
    %35 = vector.extract_strided_slice %6 {offsets = [98, 0], sizes = [14, 32], strides = [1, 1]} : vector<196x32xf32> to vector<14x32xf32>
    %c7 = arith.constant 7 : index
    %c0_21 = arith.constant 0 : index
    %c0_22 = arith.constant 0 : index
    %36 = vector.load %arg13[%c7, %c0_21, %c0_22] : memref<14x14x32xf32, #tpu.memory_space<vmem>>, vector<1x14x32xf32>
    %37 = vector.shape_cast %36 : vector<1x14x32xf32> to vector<14x32xf32>
    %38 = vector.shape_cast %35 : vector<14x32xf32> to vector<1x14x32xf32>
    tpu.vector_store %arg13[%c7, %c0_21, %c0_22], %38 {strides = array<i32>} : memref<14x14x32xf32, #tpu.memory_space<vmem>>, vector<1x14x32xf32>,
    %39 = vector.extract_strided_slice %6 {offsets = [112, 0], sizes = [14, 32], strides = [1, 1]} : vector<196x32xf32> to vector<14x32xf32>
    %c8 = arith.constant 8 : index
    %c0_23 = arith.constant 0 : index
    %c0_24 = arith.constant 0 : index
    %40 = vector.load %arg13[%c8, %c0_23, %c0_24] : memref<14x14x32xf32, #tpu.memory_space<vmem>>, vector<1x14x32xf32>
    %41 = vector.shape_cast %40 : vector<1x14x32xf32> to vector<14x32xf32>
    %42 = vector.shape_cast %39 : vector<14x32xf32> to vector<1x14x32xf32>
    tpu.vector_store %arg13[%c8, %c0_23, %c0_24], %42 {strides = array<i32>} : memref<14x14x32xf32, #tpu.memory_space<vmem>>, vector<1x14x32xf32>,
    %43 = vector.extract_strided_slice %6 {offsets = [126, 0], sizes = [14, 32], strides = [1, 1]} : vector<196x32xf32> to vector<14x32xf32>
    %c9 = arith.constant 9 : index
    %c0_25 = arith.constant 0 : index
    %c0_26 = arith.constant 0 : index
    %44 = vector.load %arg13[%c9, %c0_25, %c0_26] : memref<14x14x32xf32, #tpu.memory_space<vmem>>, vector<1x14x32xf32>
    %45 = vector.shape_cast %44 : vector<1x14x32xf32> to vector<14x32xf32>
    %46 = vector.shape_cast %43 : vector<14x32xf32> to vector<1x14x32xf32>
    tpu.vector_store %arg13[%c9, %c0_25, %c0_26], %46 {strides = array<i32>} : memref<14x14x32xf32, #tpu.memory_space<vmem>>, vector<1x14x32xf32>,
    %47 = vector.extract_strided_slice %6 {offsets = [140, 0], sizes = [14, 32], strides = [1, 1]} : vector<196x32xf32> to vector<14x32xf32>
    %c10 = arith.constant 10 : index
    %c0_27 = arith.constant 0 : index
    %c0_28 = arith.constant 0 : index
    %48 = vector.load %arg13[%c10, %c0_27, %c0_28] : memref<14x14x32xf32, #tpu.memory_space<vmem>>, vector<1x14x32xf32>
    %49 = vector.shape_cast %48 : vector<1x14x32xf32> to vector<14x32xf32>
    %50 = vector.shape_cast %47 : vector<14x32xf32> to vector<1x14x32xf32>
    tpu.vector_store %arg13[%c10, %c0_27, %c0_28], %50 {strides = array<i32>} : memref<14x14x32xf32, #tpu.memory_space<vmem>>, vector<1x14x32xf32>,
    %51 = vector.extract_strided_slice %6 {offsets = [154, 0], sizes = [14, 32], strides = [1, 1]} : vector<196x32xf32> to vector<14x32xf32>
    %c11 = arith.constant 11 : index
    %c0_29 = arith.constant 0 : index
    %c0_30 = arith.constant 0 : index
    %52 = vector.load %arg13[%c11, %c0_29, %c0_30] : memref<14x14x32xf32, #tpu.memory_space<vmem>>, vector<1x14x32xf32>
    %53 = vector.shape_cast %52 : vector<1x14x32xf32> to vector<14x32xf32>
    %54 = vector.shape_cast %51 : vector<14x32xf32> to vector<1x14x32xf32>
    tpu.vector_store %arg13[%c11, %c0_29, %c0_30], %54 {strides = array<i32>} : memref<14x14x32xf32, #tpu.memory_space<vmem>>, vector<1x14x32xf32>,
    %55 = vector.extract_strided_slice %6 {offsets = [168, 0], sizes = [14, 32], strides = [1, 1]} : vector<196x32xf32> to vector<14x32xf32>
    %c12 = arith.constant 12 : index
    %c0_31 = arith.constant 0 : index
    %c0_32 = arith.constant 0 : index
    %56 = vector.load %arg13[%c12, %c0_31, %c0_32] : memref<14x14x32xf32, #tpu.memory_space<vmem>>, vector<1x14x32xf32>
    %57 = vector.shape_cast %56 : vector<1x14x32xf32> to vector<14x32xf32>
    %58 = vector.shape_cast %55 : vector<14x32xf32> to vector<1x14x32xf32>
    tpu.vector_store %arg13[%c12, %c0_31, %c0_32], %58 {strides = array<i32>} : memref<14x14x32xf32, #tpu.memory_space<vmem>>, vector<1x14x32xf32>,
    %59 = vector.extract_strided_slice %6 {offsets = [182, 0], sizes = [14, 32], strides = [1, 1]} : vector<196x32xf32> to vector<14x32xf32>
    %c13 = arith.constant 13 : index
    %c0_33 = arith.constant 0 : index
    %c0_34 = arith.constant 0 : index
    %60 = vector.load %arg13[%c13, %c0_33, %c0_34] : memref<14x14x32xf32, #tpu.memory_space<vmem>>, vector<1x14x32xf32>
    %61 = vector.shape_cast %60 : vector<1x14x32xf32> to vector<14x32xf32>
    %62 = vector.shape_cast %59 : vector<14x32xf32> to vector<1x14x32xf32>
    tpu.vector_store %arg13[%c13, %c0_33, %c0_34], %62 {strides = array<i32>} : memref<14x14x32xf32, #tpu.memory_space<vmem>>, vector<1x14x32xf32>,
    %c0_35 = arith.constant 0 : index
    %c0_36 = arith.constant 0 : index
    %c0_37 = arith.constant 0 : index
    %63 = tpu.strided_load %arg13[%c0_35, %c0_36, %c0_37] {strides = array<i32: 1, 2, 1>} : memref<14x14x32xf32, #tpu.memory_space<vmem>>, vector<14x7x32xf32>
    %c0_38 = arith.constant 0 : index
    %c1_39 = arith.constant 1 : index
    %c0_40 = arith.constant 0 : index
    %64 = tpu.strided_load %arg13[%c0_38, %c1_39, %c0_40] {strides = array<i32: 1, 2, 1>} : memref<14x14x32xf32, #tpu.memory_space<vmem>>, vector<14x7x32xf32>
    %65 = arith.maximumf %63, %64 : vector<14x7x32xf32>
    %66 = vector.extract_strided_slice %65 {offsets = [0, 0, 0], sizes = [1, 7, 32], strides = [1, 1, 1]} : vector<14x7x32xf32> to vector<1x7x32xf32>
    %67 = vector.shape_cast %66 : vector<1x7x32xf32> to vector<7x32xf32>
    %68 = vector.extract_strided_slice %65 {offsets = [1, 0, 0], sizes = [1, 7, 32], strides = [1, 1, 1]} : vector<14x7x32xf32> to vector<1x7x32xf32>
    %69 = vector.shape_cast %68 : vector<1x7x32xf32> to vector<7x32xf32>
    %70 = arith.maximumf %67, %69 : vector<7x32xf32>
    %cst_41 = arith.constant 0.000000e+00 : f32
    %71 = vector.broadcast %cst_41 : f32 to vector<7x32xf32>
    %72 = arith.maximumf %70, %71 : vector<7x32xf32>
    %73 = vector.extract_strided_slice %65 {offsets = [2, 0, 0], sizes = [1, 7, 32], strides = [1, 1, 1]} : vector<14x7x32xf32> to vector<1x7x32xf32>
    %74 = vector.shape_cast %73 : vector<1x7x32xf32> to vector<7x32xf32>
    %75 = vector.extract_strided_slice %65 {offsets = [3, 0, 0], sizes = [1, 7, 32], strides = [1, 1, 1]} : vector<14x7x32xf32> to vector<1x7x32xf32>
    %76 = vector.shape_cast %75 : vector<1x7x32xf32> to vector<7x32xf32>
    %77 = arith.maximumf %74, %76 : vector<7x32xf32>
    %cst_42 = arith.constant 0.000000e+00 : f32
    %78 = vector.broadcast %cst_42 : f32 to vector<7x32xf32>
    %79 = arith.maximumf %77, %78 : vector<7x32xf32>
    %80 = vector.extract_strided_slice %65 {offsets = [4, 0, 0], sizes = [1, 7, 32], strides = [1, 1, 1]} : vector<14x7x32xf32> to vector<1x7x32xf32>
    %81 = vector.shape_cast %80 : vector<1x7x32xf32> to vector<7x32xf32>
    %82 = vector.extract_strided_slice %65 {offsets = [5, 0, 0], sizes = [1, 7, 32], strides = [1, 1, 1]} : vector<14x7x32xf32> to vector<1x7x32xf32>
    %83 = vector.shape_cast %82 : vector<1x7x32xf32> to vector<7x32xf32>
    %84 = arith.maximumf %81, %83 : vector<7x32xf32>
    %cst_43 = arith.constant 0.000000e+00 : f32
    %85 = vector.broadcast %cst_43 : f32 to vector<7x32xf32>
    %86 = arith.maximumf %84, %85 : vector<7x32xf32>
    %87 = vector.extract_strided_slice %65 {offsets = [6, 0, 0], sizes = [1, 7, 32], strides = [1, 1, 1]} : vector<14x7x32xf32> to vector<1x7x32xf32>
    %88 = vector.shape_cast %87 : vector<1x7x32xf32> to vector<7x32xf32>
    %89 = vector.extract_strided_slice %65 {offsets = [7, 0, 0], sizes = [1, 7, 32], strides = [1, 1, 1]} : vector<14x7x32xf32> to vector<1x7x32xf32>
    %90 = vector.shape_cast %89 : vector<1x7x32xf32> to vector<7x32xf32>
    %91 = arith.maximumf %88, %90 : vector<7x32xf32>
    %cst_44 = arith.constant 0.000000e+00 : f32
    %92 = vector.broadcast %cst_44 : f32 to vector<7x32xf32>
    %93 = arith.maximumf %91, %92 : vector<7x32xf32>
    %94 = vector.extract_strided_slice %65 {offsets = [8, 0, 0], sizes = [1, 7, 32], strides = [1, 1, 1]} : vector<14x7x32xf32> to vector<1x7x32xf32>
    %95 = vector.shape_cast %94 : vector<1x7x32xf32> to vector<7x32xf32>
    %96 = vector.extract_strided_slice %65 {offsets = [9, 0, 0], sizes = [1, 7, 32], strides = [1, 1, 1]} : vector<14x7x32xf32> to vector<1x7x32xf32>
    %97 = vector.shape_cast %96 : vector<1x7x32xf32> to vector<7x32xf32>
    %98 = arith.maximumf %95, %97 : vector<7x32xf32>
    %cst_45 = arith.constant 0.000000e+00 : f32
    %99 = vector.broadcast %cst_45 : f32 to vector<7x32xf32>
    %100 = arith.maximumf %98, %99 : vector<7x32xf32>
    %101 = vector.extract_strided_slice %65 {offsets = [10, 0, 0], sizes = [1, 7, 32], strides = [1, 1, 1]} : vector<14x7x32xf32> to vector<1x7x32xf32>
    %102 = vector.shape_cast %101 : vector<1x7x32xf32> to vector<7x32xf32>
    %103 = vector.extract_strided_slice %65 {offsets = [11, 0, 0], sizes = [1, 7, 32], strides = [1, 1, 1]} : vector<14x7x32xf32> to vector<1x7x32xf32>
    %104 = vector.shape_cast %103 : vector<1x7x32xf32> to vector<7x32xf32>
    %105 = arith.maximumf %102, %104 : vector<7x32xf32>
    %cst_46 = arith.constant 0.000000e+00 : f32
    %106 = vector.broadcast %cst_46 : f32 to vector<7x32xf32>
    %107 = arith.maximumf %105, %106 : vector<7x32xf32>
    %108 = vector.extract_strided_slice %65 {offsets = [12, 0, 0], sizes = [1, 7, 32], strides = [1, 1, 1]} : vector<14x7x32xf32> to vector<1x7x32xf32>
    %109 = vector.shape_cast %108 : vector<1x7x32xf32> to vector<7x32xf32>
    %110 = vector.extract_strided_slice %65 {offsets = [13, 0, 0], sizes = [1, 7, 32], strides = [1, 1, 1]} : vector<14x7x32xf32> to vector<1x7x32xf32>
    %111 = vector.shape_cast %110 : vector<1x7x32xf32> to vector<7x32xf32>
    %112 = arith.maximumf %109, %111 : vector<7x32xf32>
    %cst_47 = arith.constant 0.000000e+00 : f32
    %113 = vector.broadcast %cst_47 : f32 to vector<7x32xf32>
    %114 = arith.maximumf %112, %113 : vector<7x32xf32>
    %115 = vector.extract_strided_slice %72 {offsets = [0, 0], sizes = [5, 32], strides = [1, 1]} : vector<7x32xf32> to vector<5x32xf32>
    %116 = vector.extract_strided_slice %72 {offsets = [1, 0], sizes = [5, 32], strides = [1, 1]} : vector<7x32xf32> to vector<5x32xf32>
    %117 = vector.extract_strided_slice %72 {offsets = [2, 0], sizes = [5, 32], strides = [1, 1]} : vector<7x32xf32> to vector<5x32xf32>
    %118 = vector.extract_strided_slice %79 {offsets = [0, 0], sizes = [5, 32], strides = [1, 1]} : vector<7x32xf32> to vector<5x32xf32>
    %119 = vector.extract_strided_slice %79 {offsets = [1, 0], sizes = [5, 32], strides = [1, 1]} : vector<7x32xf32> to vector<5x32xf32>
    %120 = vector.extract_strided_slice %79 {offsets = [2, 0], sizes = [5, 32], strides = [1, 1]} : vector<7x32xf32> to vector<5x32xf32>
    %121 = vector.extract_strided_slice %86 {offsets = [0, 0], sizes = [5, 32], strides = [1, 1]} : vector<7x32xf32> to vector<5x32xf32>
    %122 = vector.extract_strided_slice %86 {offsets = [1, 0], sizes = [5, 32], strides = [1, 1]} : vector<7x32xf32> to vector<5x32xf32>
    %123 = vector.extract_strided_slice %86 {offsets = [2, 0], sizes = [5, 32], strides = [1, 1]} : vector<7x32xf32> to vector<5x32xf32>
    %124 = tpu.concatenate %115, %116, %117, %118, %119, %120, %121, %122, %123 in 1 : vector<5x32xf32>, vector<5x32xf32>, vector<5x32xf32>, vector<5x32xf32>, vector<5x32xf32>, vector<5x32xf32>, vector<5x32xf32>, vector<5x32xf32>, vector<5x32xf32> -> vector<5x288xf32>
    %125 = vector.extract_strided_slice %79 {offsets = [0, 0], sizes = [5, 32], strides = [1, 1]} : vector<7x32xf32> to vector<5x32xf32>
    %126 = vector.extract_strided_slice %79 {offsets = [1, 0], sizes = [5, 32], strides = [1, 1]} : vector<7x32xf32> to vector<5x32xf32>
    %127 = vector.extract_strided_slice %79 {offsets = [2, 0], sizes = [5, 32], strides = [1, 1]} : vector<7x32xf32> to vector<5x32xf32>
    %128 = vector.extract_strided_slice %86 {offsets = [0, 0], sizes = [5, 32], strides = [1, 1]} : vector<7x32xf32> to vector<5x32xf32>
    %129 = vector.extract_strided_slice %86 {offsets = [1, 0], sizes = [5, 32], strides = [1, 1]} : vector<7x32xf32> to vector<5x32xf32>
    %130 = vector.extract_strided_slice %86 {offsets = [2, 0], sizes = [5, 32], strides = [1, 1]} : vector<7x32xf32> to vector<5x32xf32>
    %131 = vector.extract_strided_slice %93 {offsets = [0, 0], sizes = [5, 32], strides = [1, 1]} : vector<7x32xf32> to vector<5x32xf32>
    %132 = vector.extract_strided_slice %93 {offsets = [1, 0], sizes = [5, 32], strides = [1, 1]} : vector<7x32xf32> to vector<5x32xf32>
    %133 = vector.extract_strided_slice %93 {offsets = [2, 0], sizes = [5, 32], strides = [1, 1]} : vector<7x32xf32> to vector<5x32xf32>
    %134 = tpu.concatenate %125, %126, %127, %128, %129, %130, %131, %132, %133 in 1 : vector<5x32xf32>, vector<5x32xf32>, vector<5x32xf32>, vector<5x32xf32>, vector<5x32xf32>, vector<5x32xf32>, vector<5x32xf32>, vector<5x32xf32>, vector<5x32xf32> -> vector<5x288xf32>
    %135 = vector.extract_strided_slice %86 {offsets = [0, 0], sizes = [5, 32], strides = [1, 1]} : vector<7x32xf32> to vector<5x32xf32>
    %136 = vector.extract_strided_slice %86 {offsets = [1, 0], sizes = [5, 32], strides = [1, 1]} : vector<7x32xf32> to vector<5x32xf32>
    %137 = vector.extract_strided_slice %86 {offsets = [2, 0], sizes = [5, 32], strides = [1, 1]} : vector<7x32xf32> to vector<5x32xf32>
    %138 = vector.extract_strided_slice %93 {offsets = [0, 0], sizes = [5, 32], strides = [1, 1]} : vector<7x32xf32> to vector<5x32xf32>
    %139 = vector.extract_strided_slice %93 {offsets = [1, 0], sizes = [5, 32], strides = [1, 1]} : vector<7x32xf32> to vector<5x32xf32>
    %140 = vector.extract_strided_slice %93 {offsets = [2, 0], sizes = [5, 32], strides = [1, 1]} : vector<7x32xf32> to vector<5x32xf32>
    %141 = vector.extract_strided_slice %100 {offsets = [0, 0], sizes = [5, 32], strides = [1, 1]} : vector<7x32xf32> to vector<5x32xf32>
    %142 = vector.extract_strided_slice %100 {offsets = [1, 0], sizes = [5, 32], strides = [1, 1]} : vector<7x32xf32> to vector<5x32xf32>
    %143 = vector.extract_strided_slice %100 {offsets = [2, 0], sizes = [5, 32], strides = [1, 1]} : vector<7x32xf32> to vector<5x32xf32>
    %144 = tpu.concatenate %135, %136, %137, %138, %139, %140, %141, %142, %143 in 1 : vector<5x32xf32>, vector<5x32xf32>, vector<5x32xf32>, vector<5x32xf32>, vector<5x32xf32>, vector<5x32xf32>, vector<5x32xf32>, vector<5x32xf32>, vector<5x32xf32> -> vector<5x288xf32>
    %145 = vector.extract_strided_slice %93 {offsets = [0, 0], sizes = [5, 32], strides = [1, 1]} : vector<7x32xf32> to vector<5x32xf32>
    %146 = vector.extract_strided_slice %93 {offsets = [1, 0], sizes = [5, 32], strides = [1, 1]} : vector<7x32xf32> to vector<5x32xf32>
    %147 = vector.extract_strided_slice %93 {offsets = [2, 0], sizes = [5, 32], strides = [1, 1]} : vector<7x32xf32> to vector<5x32xf32>
    %148 = vector.extract_strided_slice %100 {offsets = [0, 0], sizes = [5, 32], strides = [1, 1]} : vector<7x32xf32> to vector<5x32xf32>
    %149 = vector.extract_strided_slice %100 {offsets = [1, 0], sizes = [5, 32], strides = [1, 1]} : vector<7x32xf32> to vector<5x32xf32>
    %150 = vector.extract_strided_slice %100 {offsets = [2, 0], sizes = [5, 32], strides = [1, 1]} : vector<7x32xf32> to vector<5x32xf32>
    %151 = vector.extract_strided_slice %107 {offsets = [0, 0], sizes = [5, 32], strides = [1, 1]} : vector<7x32xf32> to vector<5x32xf32>
    %152 = vector.extract_strided_slice %107 {offsets = [1, 0], sizes = [5, 32], strides = [1, 1]} : vector<7x32xf32> to vector<5x32xf32>
    %153 = vector.extract_strided_slice %107 {offsets = [2, 0], sizes = [5, 32], strides = [1, 1]} : vector<7x32xf32> to vector<5x32xf32>
    %154 = tpu.concatenate %145, %146, %147, %148, %149, %150, %151, %152, %153 in 1 : vector<5x32xf32>, vector<5x32xf32>, vector<5x32xf32>, vector<5x32xf32>, vector<5x32xf32>, vector<5x32xf32>, vector<5x32xf32>, vector<5x32xf32>, vector<5x32xf32> -> vector<5x288xf32>
    %155 = vector.extract_strided_slice %100 {offsets = [0, 0], sizes = [5, 32], strides = [1, 1]} : vector<7x32xf32> to vector<5x32xf32>
    %156 = vector.extract_strided_slice %100 {offsets = [1, 0], sizes = [5, 32], strides = [1, 1]} : vector<7x32xf32> to vector<5x32xf32>
    %157 = vector.extract_strided_slice %100 {offsets = [2, 0], sizes = [5, 32], strides = [1, 1]} : vector<7x32xf32> to vector<5x32xf32>
    %158 = vector.extract_strided_slice %107 {offsets = [0, 0], sizes = [5, 32], strides = [1, 1]} : vector<7x32xf32> to vector<5x32xf32>
    %159 = vector.extract_strided_slice %107 {offsets = [1, 0], sizes = [5, 32], strides = [1, 1]} : vector<7x32xf32> to vector<5x32xf32>
    %160 = vector.extract_strided_slice %107 {offsets = [2, 0], sizes = [5, 32], strides = [1, 1]} : vector<7x32xf32> to vector<5x32xf32>
    %161 = vector.extract_strided_slice %114 {offsets = [0, 0], sizes = [5, 32], strides = [1, 1]} : vector<7x32xf32> to vector<5x32xf32>
    %162 = vector.extract_strided_slice %114 {offsets = [1, 0], sizes = [5, 32], strides = [1, 1]} : vector<7x32xf32> to vector<5x32xf32>
    %163 = vector.extract_strided_slice %114 {offsets = [2, 0], sizes = [5, 32], strides = [1, 1]} : vector<7x32xf32> to vector<5x32xf32>
    %164 = tpu.concatenate %155, %156, %157, %158, %159, %160, %161, %162, %163 in 1 : vector<5x32xf32>, vector<5x32xf32>, vector<5x32xf32>, vector<5x32xf32>, vector<5x32xf32>, vector<5x32xf32>, vector<5x32xf32>, vector<5x32xf32>, vector<5x32xf32> -> vector<5x288xf32>
    %165 = tpu.concatenate %124, %134, %144, %154, %164 in 0 : vector<5x288xf32>, vector<5x288xf32>, vector<5x288xf32>, vector<5x288xf32>, vector<5x288xf32> -> vector<25x288xf32>
    %c0_48 = arith.constant 0 : index
    %c0_49 = arith.constant 0 : index
    %166 = vector.load %arg4[%c0_48, %c0_49] : memref<288x64xf32, #tpu.memory_space<vmem>>, vector<288x64xf32>
    %cst_50 = arith.constant dense<0.000000e+00> : vector<25x64xf32>
    %167 = tpu.matmul %165, %166, %cst_50 {dimension_numbers = #tpu.dot_dimension_numbers<[1], [0], [0], [1], [0, 0, 1, 1], [], []>} : vector<25x288xf32>, vector<288x64xf32>, vector<25x64xf32> -> vector<25x64xf32>
    %c0_51 = arith.constant 0 : index
    %c0_52 = arith.constant 0 : index
    %168 = vector.load %arg5[%c0_51, %c0_52] : memref<1x64xf32, #tpu.memory_space<vmem>>, vector<1x64xf32>
    %169 = vector.broadcast %168 : vector<1x64xf32> to vector<25x64xf32>
    %170 = arith.addf %167, %169 : vector<25x64xf32>
    %cst_53 = arith.constant 0.000000e+00 : f32
    %171 = vector.broadcast %cst_53 : f32 to vector<25x64xf32>
    %172 = arith.maximumf %170, %171 : vector<25x64xf32>
    %173 = vector.extract_strided_slice %172 {offsets = [0, 0], sizes = [1, 64], strides = [1, 1]} : vector<25x64xf32> to vector<1x64xf32>
    %174 = vector.extract_strided_slice %172 {offsets = [1, 0], sizes = [1, 64], strides = [1, 1]} : vector<25x64xf32> to vector<1x64xf32>
    %175 = arith.maximumf %173, %174 : vector<1x64xf32>
    %176 = vector.extract_strided_slice %172 {offsets = [5, 0], sizes = [1, 64], strides = [1, 1]} : vector<25x64xf32> to vector<1x64xf32>
    %177 = vector.extract_strided_slice %172 {offsets = [6, 0], sizes = [1, 64], strides = [1, 1]} : vector<25x64xf32> to vector<1x64xf32>
    %178 = arith.maximumf %176, %177 : vector<1x64xf32>
    %179 = arith.maximumf %175, %178 : vector<1x64xf32>
    %180 = vector.extract_strided_slice %172 {offsets = [2, 0], sizes = [1, 64], strides = [1, 1]} : vector<25x64xf32> to vector<1x64xf32>
    %181 = vector.extract_strided_slice %172 {offsets = [3, 0], sizes = [1, 64], strides = [1, 1]} : vector<25x64xf32> to vector<1x64xf32>
    %182 = arith.maximumf %180, %181 : vector<1x64xf32>
    %183 = vector.extract_strided_slice %172 {offsets = [7, 0], sizes = [1, 64], strides = [1, 1]} : vector<25x64xf32> to vector<1x64xf32>
    %184 = vector.extract_strided_slice %172 {offsets = [8, 0], sizes = [1, 64], strides = [1, 1]} : vector<25x64xf32> to vector<1x64xf32>
    %185 = arith.maximumf %183, %184 : vector<1x64xf32>
    %186 = arith.maximumf %182, %185 : vector<1x64xf32>
    %187 = vector.extract_strided_slice %172 {offsets = [10, 0], sizes = [1, 64], strides = [1, 1]} : vector<25x64xf32> to vector<1x64xf32>
    %188 = vector.extract_strided_slice %172 {offsets = [11, 0], sizes = [1, 64], strides = [1, 1]} : vector<25x64xf32> to vector<1x64xf32>
    %189 = arith.maximumf %187, %188 : vector<1x64xf32>
    %190 = vector.extract_strided_slice %172 {offsets = [15, 0], sizes = [1, 64], strides = [1, 1]} : vector<25x64xf32> to vector<1x64xf32>
    %191 = vector.extract_strided_slice %172 {offsets = [16, 0], sizes = [1, 64], strides = [1, 1]} : vector<25x64xf32> to vector<1x64xf32>
    %192 = arith.maximumf %190, %191 : vector<1x64xf32>
    %193 = arith.maximumf %189, %192 : vector<1x64xf32>
    %194 = vector.extract_strided_slice %172 {offsets = [12, 0], sizes = [1, 64], strides = [1, 1]} : vector<25x64xf32> to vector<1x64xf32>
    %195 = vector.extract_strided_slice %172 {offsets = [13, 0], sizes = [1, 64], strides = [1, 1]} : vector<25x64xf32> to vector<1x64xf32>
    %196 = arith.maximumf %194, %195 : vector<1x64xf32>
    %197 = vector.extract_strided_slice %172 {offsets = [17, 0], sizes = [1, 64], strides = [1, 1]} : vector<25x64xf32> to vector<1x64xf32>
    %198 = vector.extract_strided_slice %172 {offsets = [18, 0], sizes = [1, 64], strides = [1, 1]} : vector<25x64xf32> to vector<1x64xf32>
    %199 = arith.maximumf %197, %198 : vector<1x64xf32>
    %200 = arith.maximumf %196, %199 : vector<1x64xf32>
    %201 = tpu.concatenate %179, %186, %193, %200 in 1 : vector<1x64xf32>, vector<1x64xf32>, vector<1x64xf32>, vector<1x64xf32> -> vector<1x256xf32>
    %c0_54 = arith.constant 0 : index
    %c0_55 = arith.constant 0 : index
    %202 = vector.load %arg6[%c0_54, %c0_55] : memref<256x64xf32, #tpu.memory_space<vmem>>, vector<256x64xf32>
    %cst_56 = arith.constant dense<0.000000e+00> : vector<1x64xf32>
    %203 = tpu.matmul %201, %202, %cst_56 {dimension_numbers = #tpu.dot_dimension_numbers<[1], [0], [0], [1], [0, 0, 1, 1], [], []>} : vector<1x256xf32>, vector<256x64xf32>, vector<1x64xf32> -> vector<1x64xf32>
    %c0_57 = arith.constant 0 : index
    %c0_58 = arith.constant 0 : index
    %204 = vector.load %arg7[%c0_57, %c0_58] : memref<1x64xf32, #tpu.memory_space<vmem>>, vector<1x64xf32>
    %205 = arith.addf %203, %204 : vector<1x64xf32>
    %cst_59 = arith.constant 0.000000e+00 : f32
    %206 = vector.broadcast %cst_59 : f32 to vector<1x64xf32>
    %207 = arith.maximumf %205, %206 : vector<1x64xf32>
    %c0_60 = arith.constant 0 : index
    %c0_61 = arith.constant 0 : index
    %208 = vector.load %arg8[%c0_60, %c0_61] : memref<64x32xf32, #tpu.memory_space<vmem>>, vector<64x32xf32>
    %cst_62 = arith.constant dense<0.000000e+00> : vector<1x32xf32>
    %209 = tpu.matmul %207, %208, %cst_62 {dimension_numbers = #tpu.dot_dimension_numbers<[1], [0], [0], [1], [0, 0, 1, 1], [], []>} : vector<1x64xf32>, vector<64x32xf32>, vector<1x32xf32> -> vector<1x32xf32>
    %c0_63 = arith.constant 0 : index
    %c0_64 = arith.constant 0 : index
    %210 = vector.load %arg9[%c0_63, %c0_64] : memref<1x32xf32, #tpu.memory_space<vmem>>, vector<1x32xf32>
    %211 = arith.addf %209, %210 : vector<1x32xf32>
    %cst_65 = arith.constant 0.000000e+00 : f32
    %212 = vector.broadcast %cst_65 : f32 to vector<1x32xf32>
    %213 = arith.maximumf %211, %212 : vector<1x32xf32>
    %c0_66 = arith.constant 0 : index
    %c0_67 = arith.constant 0 : index
    %214 = vector.load %arg10[%c0_66, %c0_67] : memref<32x3xf32, #tpu.memory_space<vmem>>, vector<32x3xf32>
    %cst_68 = arith.constant dense<0.000000e+00> : vector<1x3xf32>
    %215 = tpu.matmul %213, %214, %cst_68 {dimension_numbers = #tpu.dot_dimension_numbers<[1], [0], [0], [1], [0, 0, 1, 1], [], []>} : vector<1x32xf32>, vector<32x3xf32>, vector<1x3xf32> -> vector<1x3xf32>
    %c0_69 = arith.constant 0 : index
    %c0_70 = arith.constant 0 : index
    %216 = vector.load %arg11[%c0_69, %c0_70] : memref<1x3xf32, #tpu.memory_space<vmem>>, vector<1x3xf32>
    %217 = arith.addf %215, %216 : vector<1x3xf32>
    %c0_71 = arith.constant 0 : index
    %c0_72 = arith.constant 0 : index
    %c0_73 = arith.constant 0 : index
    %218 = vector.load %arg12[%c0_71, %c0_72, %c0_73] : memref<1x1x3xf32, #tpu.memory_space<vmem>>, vector<1x1x3xf32>
    %219 = vector.shape_cast %218 : vector<1x1x3xf32> to vector<1x3xf32>
    %220 = vector.shape_cast %217 : vector<1x3xf32> to vector<1x1x3xf32>
    tpu.vector_store %arg12[%c0_71, %c0_72, %c0_73], %220 {strides = array<i32>} : memref<1x1x3xf32, #tpu.memory_space<vmem>>, vector<1x1x3xf32>,
    return
  }
  func.func @transform_0(%arg0: i32) -> (i32, i32, i32) {
    %c0_i32 = arith.constant 0 : i32
    %c0_i32_0 = arith.constant 0 : i32
    %c0_i32_1 = arith.constant 0 : i32
    return %arg0, %c0_i32, %c0_i32_0 : i32, i32, i32
  }
  func.func @transform_1(%arg0: i32) -> (i32, i32) {
    %c0_i32 = arith.constant 0 : i32
    %c0_i32_0 = arith.constant 0 : i32
    %c0_i32_1 = arith.constant 0 : i32
    return %c0_i32, %c0_i32_0 : i32, i32
  }
  func.func @transform_2(%arg0: i32) -> (i32, i32) {
    %c0_i32 = arith.constant 0 : i32
    %c0_i32_0 = arith.constant 0 : i32
    %c0_i32_1 = arith.constant 0 : i32
    return %c0_i32, %c0_i32_0 : i32, i32
  }
  func.func @transform_3(%arg0: i32) -> (i32, i32) {
    %c0_i32 = arith.constant 0 : i32
    %c0_i32_0 = arith.constant 0 : i32
    %c0_i32_1 = arith.constant 0 : i32
    return %c0_i32, %c0_i32_0 : i32, i32
  }
  func.func @transform_4(%arg0: i32) -> (i32, i32) {
    %c0_i32 = arith.constant 0 : i32
    %c0_i32_0 = arith.constant 0 : i32
    %c0_i32_1 = arith.constant 0 : i32
    return %c0_i32, %c0_i32_0 : i32, i32
  }
  func.func @transform_5(%arg0: i32) -> (i32, i32) {
    %c0_i32 = arith.constant 0 : i32
    %c0_i32_0 = arith.constant 0 : i32
    %c0_i32_1 = arith.constant 0 : i32
    return %c0_i32, %c0_i32_0 : i32, i32
  }
  func.func @transform_6(%arg0: i32) -> (i32, i32) {
    %c0_i32 = arith.constant 0 : i32
    %c0_i32_0 = arith.constant 0 : i32
    %c0_i32_1 = arith.constant 0 : i32
    return %c0_i32, %c0_i32_0 : i32, i32
  }
  func.func @transform_7(%arg0: i32) -> (i32, i32) {
    %c0_i32 = arith.constant 0 : i32
    %c0_i32_0 = arith.constant 0 : i32
    %c0_i32_1 = arith.constant 0 : i32
    return %c0_i32, %c0_i32_0 : i32, i32
  }
  func.func @transform_8(%arg0: i32) -> (i32, i32) {
    %c0_i32 = arith.constant 0 : i32
    %c0_i32_0 = arith.constant 0 : i32
    %c0_i32_1 = arith.constant 0 : i32
    return %c0_i32, %c0_i32_0 : i32, i32
  }
  func.func @transform_9(%arg0: i32) -> (i32, i32) {
    %c0_i32 = arith.constant 0 : i32
    %c0_i32_0 = arith.constant 0 : i32
    %c0_i32_1 = arith.constant 0 : i32
    return %c0_i32, %c0_i32_0 : i32, i32
  }
  func.func @transform_10(%arg0: i32) -> (i32, i32) {
    %c0_i32 = arith.constant 0 : i32
    %c0_i32_0 = arith.constant 0 : i32
    %c0_i32_1 = arith.constant 0 : i32
    return %c0_i32, %c0_i32_0 : i32, i32
  }
  func.func @transform_11(%arg0: i32) -> (i32, i32, i32) {
    %c0_i32 = arith.constant 0 : i32
    %c0_i32_0 = arith.constant 0 : i32
    %c0_i32_1 = arith.constant 0 : i32
    return %arg0, %c0_i32, %c0_i32_0 : i32, i32, i32
  }
}

</mosaic_0001>

<llo_original>
// kernel: custom_nn_forward.1
$region0: #{custom_nn_forward.1}
  #allocation0 [shape = 'u32[]', space=smem, size = 0x4, offset = 0x4, fixed_abs, tag = 'smem constant byte address 0x4 - core index']
  #allocation1 [shape = 'u32[72,128]{1,0:T(1,128)}', space=vmem, size = 0x9000, scoped, tag = 'internal scratch']
  #allocation2 [shape = 'f32[14,14,32]{2,1,0:T(8,128)}', space=vmem, size = 0x1c000, scoped, tag = 'scratch operand']
  %s0 = inlined_call_operand.vmem [shape: f32[2,196,27], index: 0, kind: input, shape index: {}]
  %s1 = inlined_call_operand.vmem [shape: f32[27,32], index: 1, kind: input, shape index: {}]
  %s2 = inlined_call_operand.vmem [shape: f32[1,32], index: 2, kind: input, shape index: {}]
  %s3 = inlined_call_operand.vmem [shape: f32[288,64], index: 3, kind: input, shape index: {}]
  %s4 = inlined_call_operand.vmem [shape: f32[1,64], index: 4, kind: input, shape index: {}]
  %s5 = inlined_call_operand.vmem [shape: f32[256,64], index: 5, kind: input, shape index: {}]
  %s6 = inlined_call_operand.vmem [shape: f32[1,64], index: 6, kind: input, shape index: {}]
  %s7 = inlined_call_operand.vmem [shape: f32[64,32], index: 7, kind: input, shape index: {}]
  %s8 = inlined_call_operand.vmem [shape: f32[1,32], index: 8, kind: input, shape index: {}]
  %s9 = inlined_call_operand.vmem [shape: f32[32,3], index: 9, kind: input, shape index: {}]
  %s10 = inlined_call_operand.vmem [shape: f32[1,3], index: 10, kind: input, shape index: {}]
  %s11 = inlined_call_operand.hbm [shape: f32[2,1,3], index: 11, kind: output, shape index: {}]
  %s12 = sld [smem:[#allocation0]]
  $region77: #{custom_nn_forward.1} parent=0
    _
  %s14 = ssub.s32 1, %s12
  %s15 = scalar_select 0, %s14, %s12
  $region1: #{custom_nn_forward.1} parent=0
    #allocation3 [shape = 'u8[1024]{0}', space=vmem, size = 0x400, scoped, tag = 'output window, operand 0']
    #allocation4 [shape = 's32[2]{0}', space=sflag, size = 0x8, scoped, tag = 'scoped memory for custom_nn_forward.1']
    %16 = vsyncpa [#allocation4], 0
    %s17 = scalar_lea.sflag [#allocation4], 1
    %18 = vsyncpa %s17, 0
    loop: start=0, step=1, limit=4
    $region2: #{custom_nn_forward.1} parent=1 // loop_pre_header
      _
    $region3: #{custom_nn_forward.1} parent=1 // loop_header
      %s20 = sphi 0, %s24
      %p21 = scmp.ge.s32.totalorder %s20, 4
      %s30 = sphi 0, %s32
      %s33 = sphi 0, %s30
      %s34 = sphi 0, %s33
      %s50 = sphi 0, %s34
      %s54 = sphi 0, %s54
      %s56 = sphi 0, %s54
      %s57 = sphi 0, %s56
      %s71 = sphi 0, %s57
      %s75 = sphi 0, %s75
      %s77 = sphi 0, %s75
      %s78 = sphi 0, %s77
      %s92 = sphi 0, %s78
      %s96 = sphi 0, %s96
      %s98 = sphi 0, %s96
      %s99 = sphi 0, %s98
      %s113 = sphi 0, %s99
      %s117 = sphi 0, %s117
      %s119 = sphi 0, %s117
      %s120 = sphi 0, %s119
      %s134 = sphi 0, %s120
      %s138 = sphi 0, %s138
      %s140 = sphi 0, %s138
      %s141 = sphi 0, %s140
      %s155 = sphi 0, %s141
      %s159 = sphi 0, %s159
      %s161 = sphi 0, %s159
      %s162 = sphi 0, %s161
      %s176 = sphi 0, %s162
      %s180 = sphi 0, %s180
      %s182 = sphi 0, %s180
      %s183 = sphi 0, %s182
      %s197 = sphi 0, %s183
      %s201 = sphi 0, %s201
      %s203 = sphi 0, %s201
      %s204 = sphi 0, %s203
      %s218 = sphi 0, %s204
      %s222 = sphi 0, %s222
      %s224 = sphi 0, %s222
      %s225 = sphi 0, %s224
      %s239 = sphi 0, %s225
      %s243 = sphi 0, %s243
      %s245 = sphi 0, %s243
      %s246 = sphi 0, %s245
      %s260 = sphi 0, %s246
      %s266 = sphi 0, %s268
      %s269 = sphi 0, %s266
      %s270 = sphi 0, %s269
      %s286 = sphi 0, %s270
    $region4: #{custom_nn_forward.1} parent=1 // loop_header_branch
      %23 = sbr.rel (%p21) target = $region8
    $region5: #{custom_nn_forward.1} parent=1 // loop_body
      %s25 = ssub.s32 %s20, 1
      %s26 = ssub.s32 %s20, 2
      %s27 = sadd.s32 %s20, 1
      %s28 = ssub.s32 %s20, %s27
      %p29 = scmp.eq.s32.totalorder %s28, 0
      %s31 = sadd.s32 %s30, 1
      %s32 = scalar_select %p29, %s30, %s31
      %p35 = pneg %p29
      %p36 = scmp.eq.s32.totalorder %s20, 1
      %p37 = por %p35, %p36
      %p38 = scmp.ne.s32.totalorder %s30, %s33
      %p39 = scmp.eq.s32.totalorder %s20, 0
      %p40 = por %p38, %p39
      %p41 = scmp.ne.s32.totalorder %s30, %s33
      %p42 = scmp.eq.s32.totalorder %s25, 1
      %p43 = por %p41, %p42
      %p44 = scmp.ne.s32.totalorder %s33, %s34
      %p45 = scmp.eq.s32.totalorder %s25, 0
      %p46 = por %p44, %p45
      %p47 = scmp.ne.s32.totalorder %s33, %s34
      %p48 = scmp.eq.s32.totalorder %s26, 1
      %p49 = por %p47, %p48
      %p51 = scmp.ne.s32.totalorder %s34, %s50
      %p52 = scmp.eq.s32.totalorder %s26, 0
      %p53 = por %p51, %p52
      %s55 = sadd.s32 %s54, 1
      %p58 = scmp.eq.s32.totalorder %s20, 1
      %p59 = scmp.ne.s32.totalorder %s54, %s56
      %p60 = scmp.eq.s32.totalorder %s20, 0
      %p61 = por %p59, %p60
      %p62 = scmp.ne.s32.totalorder %s54, %s56
      %p63 = scmp.eq.s32.totalorder %s25, 1
      %p64 = por %p62, %p63
      %p65 = scmp.ne.s32.totalorder %s56, %s57
      %p66 = scmp.eq.s32.totalorder %s25, 0
      %p67 = por %p65, %p66
      %p68 = scmp.ne.s32.totalorder %s56, %s57
      %p69 = scmp.eq.s32.totalorder %s26, 1
      %p70 = por %p68, %p69
      %p72 = scmp.ne.s32.totalorder %s57, %s71
      %p73 = scmp.eq.s32.totalorder %s26, 0
      %p74 = por %p72, %p73
      %s76 = sadd.s32 %s75, 1
      %p79 = scmp.eq.s32.totalorder %s20, 1
      %p80 = scmp.ne.s32.totalorder %s75, %s77
      %p81 = scmp.eq.s32.totalorder %s20, 0
      %p82 = por %p80, %p81
      %p83 = scmp.ne.s32.totalorder %s75, %s77
      %p84 = scmp.eq.s32.totalorder %s25, 1
      %p85 = por %p83, %p84
      %p86 = scmp.ne.s32.totalorder %s77, %s78
      %p87 = scmp.eq.s32.totalorder %s25, 0
      %p88 = por %p86, %p87
      %p89 = scmp.ne.s32.totalorder %s77, %s78
      %p90 = scmp.eq.s32.totalorder %s26, 1
      %p91 = por %p89, %p90
      %p93 = scmp.ne.s32.totalorder %s78, %s92
      %p94 = scmp.eq.s32.totalorder %s26, 0
      %p95 = por %p93, %p94
      %s97 = sadd.s32 %s96, 1
      %p100 = scmp.eq.s32.totalorder %s20, 1
      %p101 = scmp.ne.s32.totalorder %s96, %s98
      %p102 = scmp.eq.s32.totalorder %s20, 0
      %p103 = por %p101, %p102
      %p104 = scmp.ne.s32.totalorder %s96, %s98
      %p105 = scmp.eq.s32.totalorder %s25, 1
      %p106 = por %p104, %p105
      %p107 = scmp.ne.s32.totalorder %s98, %s99
      %p108 = scmp.eq.s32.totalorder %s25, 0
      %p109 = por %p107, %p108
      %p110 = scmp.ne.s32.totalorder %s98, %s99
      %p111 = scmp.eq.s32.totalorder %s26, 1
      %p112 = por %p110, %p111
      %p114 = scmp.ne.s32.totalorder %s99, %s113
      %p115 = scmp.eq.s32.totalorder %s26, 0
      %p116 = por %p114, %p115
      %s118 = sadd.s32 %s117, 1
      %p121 = scmp.eq.s32.totalorder %s20, 1
      %p122 = scmp.ne.s32.totalorder %s117, %s119
      %p123 = scmp.eq.s32.totalorder %s20, 0
      %p124 = por %p122, %p123
      %p125 = scmp.ne.s32.totalorder %s117, %s119
      %p126 = scmp.eq.s32.totalorder %s25, 1
      %p127 = por %p125, %p126
      %p128 = scmp.ne.s32.totalorder %s119, %s120
      %p129 = scmp.eq.s32.totalorder %s25, 0
      %p130 = por %p128, %p129
      %p131 = scmp.ne.s32.totalorder %s119, %s120
      %p132 = scmp.eq.s32.totalorder %s26, 1
      %p133 = por %p131, %p132
      %p135 = scmp.ne.s32.totalorder %s120, %s134
      %p136 = scmp.eq.s32.totalorder %s26, 0
      %p137 = por %p135, %p136
      %s139 = sadd.s32 %s138, 1
      %p142 = scmp.eq.s32.totalorder %s20, 1
      %p143 = scmp.ne.s32.totalorder %s138, %s140
      %p144 = scmp.eq.s32.totalorder %s20, 0
      %p145 = por %p143, %p144
      %p146 = scmp.ne.s32.totalorder %s138, %s140
      %p147 = scmp.eq.s32.totalorder %s25, 1
      %p148 = por %p146, %p147
      %p149 = scmp.ne.s32.totalorder %s140, %s141
      %p150 = scmp.eq.s32.totalorder %s25, 0
      %p151 = por %p149, %p150
      %p152 = scmp.ne.s32.totalorder %s140, %s141
      %p153 = scmp.eq.s32.totalorder %s26, 1
      %p154 = por %p152, %p153
      %p156 = scmp.ne.s32.totalorder %s141, %s155
      %p157 = scmp.eq.s32.totalorder %s26, 0
      %p158 = por %p156, %p157
      %s160 = sadd.s32 %s159, 1
      %p163 = scmp.eq.s32.totalorder %s20, 1
      %p164 = scmp.ne.s32.totalorder %s159, %s161
      %p165 = scmp.eq.s32.totalorder %s20, 0
      %p166 = por %p164, %p165
      %p167 = scmp.ne.s32.totalorder %s159, %s161
      %p168 = scmp.eq.s32.totalorder %s25, 1
      %p169 = por %p167, %p168
      %p170 = scmp.ne.s32.totalorder %s161, %s162
      %p171 = scmp.eq.s32.totalorder %s25, 0
      %p172 = por %p170, %p171
      %p173 = scmp.ne.s32.totalorder %s161, %s162
      %p174 = scmp.eq.s32.totalorder %s26, 1
      %p175 = por %p173, %p174
      %p177 = scmp.ne.s32.totalorder %s162, %s176
      %p178 = scmp.eq.s32.totalorder %s26, 0
      %p179 = por %p177, %p178
      %s181 = sadd.s32 %s180, 1
      %p184 = scmp.eq.s32.totalorder %s20, 1
      %p185 = scmp.ne.s32.totalorder %s180, %s182
      %p186 = scmp.eq.s32.totalorder %s20, 0
      %p187 = por %p185, %p186
      %p188 = scmp.ne.s32.totalorder %s180, %s182
      %p189 = scmp.eq.s32.totalorder %s25, 1
      %p190 = por %p188, %p189
      %p191 = scmp.ne.s32.totalorder %s182, %s183
      %p192 = scmp.eq.s32.totalorder %s25, 0
      %p193 = por %p191, %p192
      %p194 = scmp.ne.s32.totalorder %s182, %s183
      %p195 = scmp.eq.s32.totalorder %s26, 1
      %p196 = por %p194, %p195
      %p198 = scmp.ne.s32.totalorder %s183, %s197
      %p199 = scmp.eq.s32.totalorder %s26, 0
      %p200 = por %p198, %p199
      %s202 = sadd.s32 %s201, 1
      %p205 = scmp.eq.s32.totalorder %s20, 1
      %p206 = scmp.ne.s32.totalorder %s201, %s203
      %p207 = scmp.eq.s32.totalorder %s20, 0
      %p208 = por %p206, %p207
      %p209 = scmp.ne.s32.totalorder %s201, %s203
      %p210 = scmp.eq.s32.totalorder %s25, 1
      %p211 = por %p209, %p210
      %p212 = scmp.ne.s32.totalorder %s203, %s204
      %p213 = scmp.eq.s32.totalorder %s25, 0
      %p214 = por %p212, %p213
      %p215 = scmp.ne.s32.totalorder %s203, %s204
      %p216 = scmp.eq.s32.totalorder %s26, 1
      %p217 = por %p215, %p216
      %p219 = scmp.ne.s32.totalorder %s204, %s218
      %p220 = scmp.eq.s32.totalorder %s26, 0
      %p221 = por %p219, %p220
      %s223 = sadd.s32 %s222, 1
      %p226 = scmp.eq.s32.totalorder %s20, 1
      %p227 = scmp.ne.s32.totalorder %s222, %s224
      %p228 = scmp.eq.s32.totalorder %s20, 0
      %p229 = por %p227, %p228
      %p230 = scmp.ne.s32.totalorder %s222, %s224
      %p231 = scmp.eq.s32.totalorder %s25, 1
      %p232 = por %p230, %p231
      %p233 = scmp.ne.s32.totalorder %s224, %s225
      %p234 = scmp.eq.s32.totalorder %s25, 0
      %p235 = por %p233, %p234
      %p236 = scmp.ne.s32.totalorder %s224, %s225
      %p237 = scmp.eq.s32.totalorder %s26, 1
      %p238 = por %p236, %p237
      %p240 = scmp.ne.s32.totalorder %s225, %s239
      %p241 = scmp.eq.s32.totalorder %s26, 0
      %p242 = por %p240, %p241
      %s244 = sadd.s32 %s243, 1
      %p247 = scmp.eq.s32.totalorder %s20, 1
      %p248 = scmp.ne.s32.totalorder %s243, %s245
      %p249 = scmp.eq.s32.totalorder %s20, 0
      %p250 = por %p248, %p249
      %p251 = scmp.ne.s32.totalorder %s243, %s245
      %p252 = scmp.eq.s32.totalorder %s25, 1
      %p253 = por %p251, %p252
      %p254 = scmp.ne.s32.totalorder %s245, %s246
      %p255 = scmp.eq.s32.totalorder %s25, 0
      %p256 = por %p254, %p255
      %p257 = scmp.ne.s32.totalorder %s245, %s246
      %p258 = scmp.eq.s32.totalorder %s26, 1
      %p259 = por %p257, %p258
      %p261 = scmp.ne.s32.totalorder %s246, %s260
      %p262 = scmp.eq.s32.totalorder %s26, 0
      %p263 = por %p261, %p262
      %s264 = ssub.s32 %s20, %s27
      %p265 = scmp.eq.s32.totalorder %s264, 0
      %s267 = sadd.s32 %s266, 1
      %s268 = scalar_select %p265, %s266, %s267
      %p271 = pneg %p265
      %p272 = scmp.eq.s32.totalorder %s20, 1
      %p273 = por %p271, %p272
      %p274 = scmp.ne.s32.totalorder %s266, %s269
      %p275 = scmp.eq.s32.totalorder %s20, 0
      %p276 = por %p274, %p275
      %p277 = scmp.ne.s32.totalorder %s266, %s269
      %p278 = scmp.eq.s32.totalorder %s25, 1
      %p279 = por %p277, %p278
      %p280 = scmp.ne.s32.totalorder %s269, %s270
      %p281 = scmp.eq.s32.totalorder %s25, 0
      %p282 = por %p280, %p281
      %p283 = scmp.ne.s32.totalorder %s269, %s270
      %p284 = scmp.eq.s32.totalorder %s26, 1
      %p285 = por %p283, %p284
      %p287 = scmp.ne.s32.totalorder %s270, %s286
      %p288 = scmp.eq.s32.totalorder %s26, 0
      %p289 = por %p287, %p288
      %p290 = scmp.le.s32.totalorder 1, %s20
      %p291 = scmp.lt.s32.totalorder %s20, 3
      %p292 = pnand %p290, %p291
      %p293 = pneg %p292
      // Predicated region
      $region9: #{custom_nn_forward.1} parent=5 // pred_check
        _
      $region10: #{custom_nn_forward.1} parent=5 // pred_check_branch
        %295 = sbr.rel (%p292) target = $region12
      $region11: #{custom_nn_forward.1} parent=5 // pred_region
        %s296 = ssub.s32 %s20, 1
        // Predicated region
        $region13: #{custom_nn_forward.1} parent=11 // pred_check
          %p297 = pneg %p67
        $region14: #{custom_nn_forward.1} parent=11 // pred_check_branch
          %299 = sbr.rel (%p297) target = $region16
        $region15: #{custom_nn_forward.1} parent=11 // pred_region
          _
        $region16: #{custom_nn_forward.1} parent=11 // pred_fallthru
          _
        // Predicated region
        $region17: #{custom_nn_forward.1} parent=11 // pred_check
          %p300 = pneg %p88
        $region18: #{custom_nn_forward.1} parent=11 // pred_check_branch
          %302 = sbr.rel (%p300) target = $region20
        $region19: #{custom_nn_forward.1} parent=11 // pred_region
          _
        $region20: #{custom_nn_forward.1} parent=11 // pred_fallthru
          _
        // Predicated region
        $region21: #{custom_nn_forward.1} parent=11 // pred_check
          %p303 = pneg %p109
        $region22: #{custom_nn_forward.1} parent=11 // pred_check_branch
          %305 = sbr.rel (%p303) target = $region24
        $region23: #{custom_nn_forward.1} parent=11 // pred_region
          _
        $region24: #{custom_nn_forward.1} parent=11 // pred_fallthru
          _
        // Predicated region
        $region25: #{custom_nn_forward.1} parent=11 // pred_check
          %p306 = pneg %p130
        $region26: #{custom_nn_forward.1} parent=11 // pred_check_branch
          %308 = sbr.rel (%p306) target = $region28
        $region27: #{custom_nn_forward.1} parent=11 // pred_region
          _
        $region28: #{custom_nn_forward.1} parent=11 // pred_fallthru
          _
        // Predicated region
        $region29: #{custom_nn_forward.1} parent=11 // pred_check
          %p309 = pneg %p151
        $region30: #{custom_nn_forward.1} parent=11 // pred_check_branch
          %311 = sbr.rel (%p309) target = $region32
        $region31: #{custom_nn_forward.1} parent=11 // pred_region
          _
        $region32: #{custom_nn_forward.1} parent=11 // pred_fallthru
          _
        // Predicated region
        $region33: #{custom_nn_forward.1} parent=11 // pred_check
          %p312 = pneg %p172
        $region34: #{custom_nn_forward.1} parent=11 // pred_check_branch
          %314 = sbr.rel (%p312) target = $region36
        $region35: #{custom_nn_forward.1} parent=11 // pred_region
          _
        $region36: #{custom_nn_forward.1} parent=11 // pred_fallthru
          _
        // Predicated region
        $region37: #{custom_nn_forward.1} parent=11 // pred_check
          %p315 = pneg %p193
        $region38: #{custom_nn_forward.1} parent=11 // pred_check_branch
          %317 = sbr.rel (%p315) target = $region40
        $region39: #{custom_nn_forward.1} parent=11 // pred_region
          _
        $region40: #{custom_nn_forward.1} parent=11 // pred_fallthru
          _
        // Predicated region
        $region41: #{custom_nn_forward.1} parent=11 // pred_check
          %p318 = pneg %p214
        $region42: #{custom_nn_forward.1} parent=11 // pred_check_branch
          %320 = sbr.rel (%p318) target = $region44
        $region43: #{custom_nn_forward.1} parent=11 // pred_region
          _
        $region44: #{custom_nn_forward.1} parent=11 // pred_fallthru
          _
        // Predicated region
        $region45: #{custom_nn_forward.1} parent=11 // pred_check
          %p321 = pneg %p235
        $region46: #{custom_nn_forward.1} parent=11 // pred_check_branch
          %323 = sbr.rel (%p321) target = $region48
        $region47: #{custom_nn_forward.1} parent=11 // pred_region
          _
        $region48: #{custom_nn_forward.1} parent=11 // pred_fallthru
          _
        // Predicated region
        $region49: #{custom_nn_forward.1} parent=11 // pred_check
          %p324 = pneg %p256
        $region50: #{custom_nn_forward.1} parent=11 // pred_check_branch
          %326 = sbr.rel (%p324) target = $region52
        $region51: #{custom_nn_forward.1} parent=11 // pred_region
          _
        $region52: #{custom_nn_forward.1} parent=11 // pred_fallthru
          _
      $region12: #{custom_nn_forward.1} parent=5 // pred_fallthru
        _
      %p327 = scmp.lt.s32.totalorder %s20, 2
      // Predicated region
      $region53: #{custom_nn_forward.1} parent=5 // pred_check
        %p328 = pneg %p327
      $region54: #{custom_nn_forward.1} parent=5 // pred_check_branch
        %330 = sbr.rel (%p328) target = $region56
      $region55: #{custom_nn_forward.1} parent=5 // pred_region
        // Predicated region
        $region57: #{custom_nn_forward.1} parent=55 // pred_check
          %p331 = pneg %p40
        $region58: #{custom_nn_forward.1} parent=55 // pred_check_branch
          %333 = sbr.rel (%p331) target = $region60
        $region59: #{custom_nn_forward.1} parent=55 // pred_region
          %p334 = scmp.lt.s32.totalorder %s20, 1
          %s335 = scalar_select %p334, %s20, 1
          %s336 = smul.addr %s335, 25
          %s337 = smul.addr %s336, 8
          %s338 = scalar_lea.vmem %s0, %s337
        $region60: #{custom_nn_forward.1} parent=55 // pred_fallthru
          _
      $region56: #{custom_nn_forward.1} parent=5 // pred_fallthru
        _
      %p339 = scmp.le.s32.totalorder 1, %s20
      %p340 = scmp.lt.s32.totalorder %s20, 3
      %p341 = pnand %p339, %p340
      %p342 = pneg %p341
      // Predicated region
      $region61: #{custom_nn_forward.1} parent=5 // pred_check
        _
      $region62: #{custom_nn_forward.1} parent=5 // pred_check_branch
        %344 = sbr.rel (%p341) target = $region64
      $region63: #{custom_nn_forward.1} parent=5 // pred_region
        %s345 = ssub.s32 %s20, 1
        %p346 = scmp.lt.s32.totalorder %s25, 1
        %s347 = scalar_select %p346, %s25, 1
        %s348 = smul.addr %s347, 25
        %s349 = smul.addr %s348, 8
        %s350 = scalar_lea.vmem %s0, %s349
        %p351 = pneg %p46
        %p352 = pneg %p43
        %p353 = pneg %p67
        %p354 = pneg %p64
        %p355 = pneg %p88
        %p356 = pneg %p85
        %p357 = pneg %p109
        %p358 = pneg %p106
        %p359 = pneg %p130
        %p360 = pneg %p127
        %p361 = pneg %p151
        %p362 = pneg %p148
        %p363 = pneg %p172
        %p364 = pneg %p169
        %p365 = pneg %p193
        %p366 = pneg %p190
        %p367 = pneg %p214
        %p368 = pneg %p211
        %p369 = pneg %p235
        %p370 = pneg %p232
        %p371 = pneg %p256
        %p372 = pneg %p253
        %p373 = pneg %p282
        %p374 = pneg %p279
        %s375 = sand.u32 %s269, 1
        %s376 = scalar_lea.sflag [#allocation4], %s375
        %s377 = sand.u32 %s269, 1
        %s378 = scalar_lea.vmem [#allocation3], %s377
        %p379 = scmp.lt.s32.totalorder %s25, 1
        %s380 = scalar_select %p379, %s25, 1
        %s381 = smul.addr %s380, 25
        %s382 = smul.addr %s381, 8
        %s383 = scalar_lea.vmem %s0, %s382
        %v384 = vld [vmem:[%s383] sm:$0xff]
        %v385 = vld [vmem:[%s383 + $0x8] sm:$0xff]
        %v386 = vld [vmem:[%s383 + $0x10] sm:$0xff]
        %v387 = vld [vmem:[%s383 + $0x18] sm:$0xff]
        %v388 = vld [vmem:[%s383 + $0x20] sm:$0xff]
        %v389 = vld [vmem:[%s383 + $0x28] sm:$0xff]
        %v390 = vld [vmem:[%s383 + $0x30] sm:$0xff]
        %v391 = vld [vmem:[%s383 + $0x38] sm:$0xff]
        %v392 = vld [vmem:[%s383 + $0x40] sm:$0xff]
        %v393 = vld [vmem:[%s383 + $0x48] sm:$0xff]
        %v394 = vld [vmem:[%s383 + $0x50] sm:$0xff]
        %v395 = vld [vmem:[%s383 + $0x58] sm:$0xff]
        %v396 = vld [vmem:[%s383 + $0x60] sm:$0xff]
        %v397 = vld [vmem:[%s383 + $0x68] sm:$0xff]
        %v398 = vld [vmem:[%s383 + $0x70] sm:$0xff]
        %v399 = vld [vmem:[%s383 + $0x78] sm:$0xff]
        %v400 = vld [vmem:[%s383 + $0x80] sm:$0xff]
        %v401 = vld [vmem:[%s383 + $0x88] sm:$0xff]
        %v402 = vld [vmem:[%s383 + $0x90] sm:$0xff]
        %v403 = vld [vmem:[%s383 + $0x98] sm:$0xff]
        %v404 = vld [vmem:[%s383 + $0xa0] sm:$0xff]
        %v405 = vld [vmem:[%s383 + $0xa8] sm:$0xff]
        %v406 = vld [vmem:[%s383 + $0xb0] sm:$0xff]
        %v407 = vld [vmem:[%s383 + $0xb8] sm:$0xff]
        %v408 = vld [vmem:[%s383 + $0xc0] sm:$0xf]
        %v409 = vld [vmem:[%s1] sm:$0xff]
        %v410 = vld [vmem:[%s1 + $0x8] sm:$0xff]
        %v411 = vld [vmem:[%s1 + $0x10] sm:$0xff]
        %v412 = vld [vmem:[%s1 + $0x18] sm:$0x7]
        %v413 = vld [vmem:[%s2] sm:$0x1]
        %v415 = vperm.slane %v413, 0
        %vm417 = vcmask 220160
        %v419 = vsel %vm417, %v384, 0
        %v422 = vsel %vm417, %v385, 0
        %v425 = vsel %vm417, %v386, 0
        %v428 = vsel %vm417, %v387, 0
        %v431 = vsel %vm417, %v388, 0
        %v434 = vsel %vm417, %v389, 0
        %v437 = vsel %vm417, %v390, 0
        %v440 = vsel %vm417, %v391, 0
        %v443 = vsel %vm417, %v392, 0
        %v446 = vsel %vm417, %v393, 0
        %v449 = vsel %vm417, %v394, 0
        %v452 = vsel %vm417, %v395, 0
        %v455 = vsel %vm417, %v396, 0
        %v458 = vsel %vm417, %v397, 0
        %v461 = vsel %vm417, %v398, 0
        %v464 = vsel %vm417, %v399, 0
        %v467 = vsel %vm417, %v400, 0
        %v470 = vsel %vm417, %v401, 0
        %v473 = vsel %vm417, %v402, 0
        %v476 = vsel %vm417, %v403, 0
        %v479 = vsel %vm417, %v404, 0
        %v482 = vsel %vm417, %v405, 0
        %v485 = vsel %vm417, %v406, 0
        %v488 = vsel %vm417, %v407, 0
        %v491 = vsel %vm417, %v408, 0
        %vm493 = vcmask 1042432
        %v495 = vsel %vm493, %v412, 0
        %497 = vmatpush.msra.mxu0 0.0
        %498 = vmatpush.msra.mxu0 0.0
        %499 = vmatpush.msra.mxu0 0.0
        %500 = vmatpush.msra.mxu0 0.0
        %501 = vmatpush.msra.mxu0 0.0
        %502 = vmatpush.msra.mxu0 0.0
        %503 = vmatpush.msra.mxu0 0.0
        %504 = vmatpush.msra.mxu0 0.0
        %505 = vmatpush.msra.mxu0 0.0
        %506 = vmatpush.msra.mxu0 0.0
        %507 = vmatpush.msra.mxu0 0.0
        %508 = vmatpush.msra.mxu0 0.0
        %509 = vmatpush.msra.mxu0 %v495
        %510 = vmatpush.msra.mxu0 %v411
        %511 = vmatpush.msra.mxu0 %v410
        %512 = vmatpush.msra.mxu0 %v409
        %513 = vmatmul.f32.gmra.mxu0 %v419
        %v514 = vpop.f32.mrf.mxu0
        %v515 = vadd.f32 %v415, %v514
        %516 = vmatmul.f32.gmra.mxu0 %v422
        %v517 = vpop.f32.mrf.mxu0
        %v518 = vadd.f32 %v415, %v517
        %519 = vmatmul.f32.gmra.mxu0 %v425
        %v520 = vpop.f32.mrf.mxu0
        %v521 = vadd.f32 %v415, %v520
        %522 = vmatmul.f32.gmra.mxu0 %v428
        %v523 = vpop.f32.mrf.mxu0
        %v524 = vadd.f32 %v415, %v523
        %525 = vmatmul.f32.gmra.mxu0 %v431
        %v526 = vpop.f32.mrf.mxu0
        %v527 = vadd.f32 %v415, %v526
        %528 = vmatmul.f32.gmra.mxu0 %v434
        %v529 = vpop.f32.mrf.mxu0
        %v530 = vadd.f32 %v415, %v529
        %531 = vmatmul.f32.gmra.mxu0 %v437
        %v532 = vpop.f32.mrf.mxu0
        %v533 = vadd.f32 %v415, %v532
        %534 = vmatmul.f32.gmra.mxu0 %v440
        %v535 = vpop.f32.mrf.mxu0
        %v536 = vadd.f32 %v415, %v535
        %537 = vmatmul.f32.gmra.mxu0 %v443
        %v538 = vpop.f32.mrf.mxu0
        %v539 = vadd.f32 %v415, %v538
        %540 = vmatmul.f32.gmra.mxu0 %v446
        %v541 = vpop.f32.mrf.mxu0
        %v542 = vadd.f32 %v415, %v541
        %543 = vmatmul.f32.gmra.mxu0 %v449
        %v544 = vpop.f32.mrf.mxu0
        %v545 = vadd.f32 %v415, %v544
        %546 = vmatmul.f32.gmra.mxu0 %v452
        %v547 = vpop.f32.mrf.mxu0
        %v548 = vadd.f32 %v415, %v547
        %549 = vmatmul.f32.gmra.mxu0 %v455
        %v550 = vpop.f32.mrf.mxu0
        %v551 = vadd.f32 %v415, %v550
        %552 = vmatmul.f32.gmra.mxu0 %v458
        %v553 = vpop.f32.mrf.mxu0
        %v554 = vadd.f32 %v415, %v553
        %555 = vmatmul.f32.gmra.mxu0 %v461
        %v556 = vpop.f32.mrf.mxu0
        %v557 = vadd.f32 %v415, %v556
        %558 = vmatmul.f32.gmra.mxu0 %v464
        %v559 = vpop.f32.mrf.mxu0
        %v560 = vadd.f32 %v415, %v559
        %561 = vmatmul.f32.gmra.mxu0 %v467
        %v562 = vpop.f32.mrf.mxu0
        %v563 = vadd.f32 %v415, %v562
        %564 = vmatmul.f32.gmra.mxu0 %v470
        %v565 = vpop.f32.mrf.mxu0
        %v566 = vadd.f32 %v415, %v565
        %567 = vmatmul.f32.gmra.mxu0 %v473
        %v568 = vpop.f32.mrf.mxu0
        %v569 = vadd.f32 %v415, %v568
        %570 = vmatmul.f32.gmra.mxu0 %v476
        %v571 = vpop.f32.mrf.mxu0
        %v572 = vadd.f32 %v415, %v571
        %573 = vmatmul.f32.gmra.mxu0 %v479
        %v574 = vpop.f32.mrf.mxu0
        %v575 = vadd.f32 %v415, %v574
        %576 = vmatmul.f32.gmra.mxu0 %v482
        %v577 = vpop.f32.mrf.mxu0
        %v578 = vadd.f32 %v415, %v577
        %579 = vmatmul.f32.gmra.mxu0 %v485
        %v580 = vpop.f32.mrf.mxu0
        %v581 = vadd.f32 %v415, %v580
        %582 = vmatmul.f32.gmra.mxu0 %v488
        %v583 = vpop.f32.mrf.mxu0
        %v584 = vadd.f32 %v415, %v583
        %585 = vmatmul.f32.gmra.mxu0 %v491
        %v586 = vpop.f32.mrf.mxu0
        %v587 = vadd.f32 %v415, %v586
        %588 = vdwg.mxu0
        %vm589 = vcmask 261120
        %590 = vst.msk [vmem:[#allocation2] sm:$0xff] %vm589, %v515
        %vm591 = vcmask 259072
        %592 = vst.msk [vmem:[#allocation2 + $0x8] sm:$0x3f] %vm591, %v518
        %s593 = scalar_lea.vmem [#allocation2], 16
        %vm594 = vcmask 261126
        %595 = vst.msk [vmem:[%s593 - $0x6] sm:$0xc0] %vm594, %v518
        %596 = vst.msk [vmem:[%s593 + $0x2] sm:$0xff] %vm589, %v521
        %vm597 = vcmask 257024
        %598 = vst.msk [vmem:[%s593 + $0xa] sm:$0xf] %vm597, %v524
        %s599 = scalar_lea.vmem [#allocation2], 32
        %vm600 = vcmask 261124
        %601 = vst.msk [vmem:[%s599 - $0x4] sm:$0xf0] %vm600, %v524
        %602 = vst.msk [vmem:[%s599 + $0x4] sm:$0xff] %vm589, %v527
        %vm603 = vcmask 254976
        %604 = vst.msk [vmem:[%s599 + $0xc] sm:$0x3] %vm603, %v530
        %s605 = scalar_lea.vmem [#allocation2], 48
        %vm606 = vcmask 261122
        %607 = vst.msk [vmem:[%s605 - $0x2] sm:$0xfc] %vm606, %v530
        %608 = vst.msk [vmem:[%s605 + $0x6] sm:$0xff] %vm589, %v533
        %s609 = scalar_lea.vmem [#allocation2], 64
        %610 = vst.msk [vmem:[%s609] sm:$0xff] %vm589, %v536
        %611 = vst.msk [vmem:[%s609 + $0x8] sm:$0x3f] %vm591, %v539
        %s612 = scalar_lea.vmem [#allocation2], 80
        %613 = vst.msk [vmem:[%s612 - $0x6] sm:$0xc0] %vm594, %v539
        %614 = vst.msk [vmem:[%s612 + $0x2] sm:$0xff] %vm589, %v542
        %615 = vst.msk [vmem:[%s612 + $0xa] sm:$0xf] %vm597, %v545
        %s616 = scalar_lea.vmem [#allocation2], 96
        %617 = vst.msk [vmem:[%s616 - $0x4] sm:$0xf0] %vm600, %v545
        %618 = vst.msk [vmem:[%s616 + $0x4] sm:$0xff] %vm589, %v548
        %619 = vst.msk [vmem:[%s616 + $0xc] sm:$0x3] %vm603, %v551
        %s620 = scalar_lea.vmem [#allocation2], 112
        %621 = vst.msk [vmem:[%s620 - $0x2] sm:$0xfc] %vm606, %v551
        %622 = vst.msk [vmem:[%s620 + $0x6] sm:$0xff] %vm589, %v554
        %s623 = scalar_lea.vmem [#allocation2], 128
        %624 = vst.msk [vmem:[%s623] sm:$0xff] %vm589, %v557
        %625 = vst.msk [vmem:[%s623 + $0x8] sm:$0x3f] %vm591, %v560
        %s626 = scalar_lea.vmem [#allocation2], 144
        %627 = vst.msk [vmem:[%s626 - $0x6] sm:$0xc0] %vm594, %v560
        %628 = vst.msk [vmem:[%s626 + $0x2] sm:$0xff] %vm589, %v563
        %629 = vst.msk [vmem:[%s626 + $0xa] sm:$0xf] %vm597, %v566
        %s630 = scalar_lea.vmem [#allocation2], 160
        %631 = vst.msk [vmem:[%s630 - $0x4] sm:$0xf0] %vm600, %v566
        %632 = vst.msk [vmem:[%s630 + $0x4] sm:$0xff] %vm589, %v569
        %633 = vst.msk [vmem:[%s630 + $0xc] sm:$0x3] %vm603, %v572
        %s634 = scalar_lea.vmem [#allocation2], 176
        %635 = vst.msk [vmem:[%s634 - $0x2] sm:$0xfc] %vm606, %v572
        %636 = vst.msk [vmem:[%s634 + $0x6] sm:$0xff] %vm589, %v575
        %s637 = scalar_lea.vmem [#allocation2], 192
        %638 = vst.msk [vmem:[%s637] sm:$0xff] %vm589, %v578
        %639 = vst.msk [vmem:[%s637 + $0x8] sm:$0x3f] %vm591, %v581
        %s640 = scalar_lea.vmem [#allocation2], 208
        %641 = vst.msk [vmem:[%s640 - $0x6] sm:$0xc0] %vm594, %v581
        %642 = vst.msk [vmem:[%s640 + $0x2] sm:$0xff] %vm589, %v584
        %643 = vst.msk [vmem:[%s640 + $0xa] sm:$0xf] %vm597, %v587
        %v644 = vld [vmem:[#allocation2] ss:$2 sm:$0x7f]
        %s645 = scalar_lea.vmem [#allocation2], 16
        %v646 = vld [vmem:[%s645] ss:$2 sm:$0x7f]
        %s647 = scalar_lea.vmem [#allocation2], 32
        %v648 = vld [vmem:[%s647] ss:$2 sm:$0x7f]
        %s649 = scalar_lea.vmem [#allocation2], 48
        %v650 = vld [vmem:[%s649] ss:$2 sm:$0x7f]
        %s651 = scalar_lea.vmem [#allocation2], 64
        %v652 = vld [vmem:[%s651] ss:$2 sm:$0x7f]
        %s653 = scalar_lea.vmem [#allocation2], 80
        %v654 = vld [vmem:[%s653] ss:$2 sm:$0x7f]
        %s655 = scalar_lea.vmem [#allocation2], 96
        %v656 = vld [vmem:[%s655] ss:$2 sm:$0x7f]
        %s657 = scalar_lea.vmem [#allocation2], 112
        %v658 = vld [vmem:[%s657] ss:$2 sm:$0x7f]
        %s659 = scalar_lea.vmem [#allocation2], 128
        %v660 = vld [vmem:[%s659] ss:$2 sm:$0x7f]
        %s661 = scalar_lea.vmem [#allocation2], 144
        %v662 = vld [vmem:[%s661] ss:$2 sm:$0x7f]
        %s663 = scalar_lea.vmem [#allocation2], 160
        %v664 = vld [vmem:[%s663] ss:$2 sm:$0x7f]
        %s665 = scalar_lea.vmem [#allocation2], 176
        %v666 = vld [vmem:[%s665] ss:$2 sm:$0x7f]
        %s667 = scalar_lea.vmem [#allocation2], 192
        %v668 = vld [vmem:[%s667] ss:$2 sm:$0x7f]
        %s669 = scalar_lea.vmem [#allocation2], 208
        %v670 = vld [vmem:[%s669] ss:$2 sm:$0x7f]
        %s671 = scalar_lea.vmem [#allocation2], 1
        %v672 = vld [vmem:[%s671] ss:$2 sm:$0x7f]
        %s673 = scalar_lea.vmem [#allocation2], 17
        %v674 = vld [vmem:[%s673] ss:$2 sm:$0x7f]
        %s675 = scalar_lea.vmem [#allocation2], 33
        %v676 = vld [vmem:[%s675] ss:$2 sm:$0x7f]
        %s677 = scalar_lea.vmem [#allocation2], 49
        %v678 = vld [vmem:[%s677] ss:$2 sm:$0x7f]
        %s679 = scalar_lea.vmem [#allocation2], 65
        %v680 = vld [vmem:[%s679] ss:$2 sm:$0x7f]
        %s681 = scalar_lea.vmem [#allocation2], 81
        %v682 = vld [vmem:[%s681] ss:$2 sm:$0x7f]
        %s683 = scalar_lea.vmem [#allocation2], 97
        %v684 = vld [vmem:[%s683] ss:$2 sm:$0x7f]
        %s685 = scalar_lea.vmem [#allocation2], 113
        %v686 = vld [vmem:[%s685] ss:$2 sm:$0x7f]
        %s687 = scalar_lea.vmem [#allocation2], 129
        %v688 = vld [vmem:[%s687] ss:$2 sm:$0x7f]
        %s689 = scalar_lea.vmem [#allocation2], 145
        %v690 = vld [vmem:[%s689] ss:$2 sm:$0x7f]
        %s691 = scalar_lea.vmem [#allocation2], 161
        %v692 = vld [vmem:[%s691] ss:$2 sm:$0x7f]
        %s693 = scalar_lea.vmem [#allocation2], 177
        %v694 = vld [vmem:[%s693] ss:$2 sm:$0x7f]
        %s695 = scalar_lea.vmem [#allocation2], 193
        %v696 = vld [vmem:[%s695] ss:$2 sm:$0x7f]
        %s697 = scalar_lea.vmem [#allocation2], 209
        %v698 = vld [vmem:[%s697] ss:$2 sm:$0x7f]
        %v699 = vmax.f32 %v644, %v672
        %v700 = vmax.f32 %v646, %v674
        %v701 = vmax.f32 %v648, %v676
        %v702 = vmax.f32 %v650, %v678
        %v703 = vmax.f32 %v652, %v680
        %v704 = vmax.f32 %v654, %v682
        %v705 = vmax.f32 %v656, %v684
        %v706 = vmax.f32 %v658, %v686
        %v707 = vmax.f32 %v660, %v688
        %v708 = vmax.f32 %v662, %v690
        %v709 = vmax.f32 %v664, %v692
        %v710 = vmax.f32 %v666, %v694
        %v711 = vmax.f32 %v668, %v696
        %v712 = vmax.f32 %v670, %v698
        %v713 = vmax.f32 %v699, %v700
        %v714 = vmax.f32 %v713, 0.0
        %v715 = vmax.f32 %v701, %v702
        %v716 = vmax.f32 %v715, 0.0
        %v717 = vmax.f32 %v703, %v704
        %v718 = vmax.f32 %v717, 0.0
        %v719 = vmax.f32 %v705, %v706
        %v720 = vmax.f32 %v719, 0.0
        %v721 = vmax.f32 %v707, %v708
        %v722 = vmax.f32 %v721, 0.0
        %v723 = vmax.f32 %v709, %v710
        %v724 = vmax.f32 %v723, 0.0
        %v725 = vmax.f32 %v711, %v712
        %v726 = vmax.f32 %v725, 0.0
        %v728 = vrot.slane %v714, 1
        %729 = vrot.lane.b32.xlu0 %v728, 32
        %v730 = vpop.permute.xlu0 %729
        %v732 = vrot.slane %v714, 2
        %733 = vrot.lane.b32.xlu0 %v732, 64
        %v734 = vpop.permute.xlu0 %733
        %737 = vrot.lane.b32.xlu0 %v716, 96
        %v738 = vpop.permute.xlu0 %737
        %v740 = vrot.slane %v716, 1
        %v742 = vrot.slane %v716, 2
        %743 = vrot.lane.b32.xlu0 %v742, 32
        %v744 = vpop.permute.xlu0 %743
        %747 = vrot.lane.b32.xlu0 %v718, 64
        %v748 = vpop.permute.xlu0 %747
        %v750 = vrot.slane %v718, 1
        %751 = vrot.lane.b32.xlu0 %v750, 96
        %v752 = vpop.permute.xlu0 %751
        %v754 = vrot.slane %v718, 2
        %v756 = vsel %vm589, %v714, %v730
        %vm757 = vcmask 523264
        %v758 = vsel %vm757, %v756, %v734
        %vm759 = vcmask 785408
        %v760 = vsel %vm759, %v758, %v738
        %v761 = vsel %vm589, %v740, %v744
        %v762 = vsel %vm757, %v761, %v748
        %v763 = vsel %vm759, %v762, %v752
        %764 = vrot.lane.b32.xlu0 %v740, 32
        %v765 = vpop.permute.xlu0 %764
        %767 = vrot.lane.b32.xlu0 %v742, 64
        %v768 = vpop.permute.xlu0 %767
        %770 = vrot.lane.b32.xlu0 %v718, 96
        %v771 = vpop.permute.xlu0 %770
        %774 = vrot.lane.b32.xlu0 %v754, 32
        %v775 = vpop.permute.xlu0 %774
        %778 = vrot.lane.b32.xlu0 %v720, 64
        %v779 = vpop.permute.xlu0 %778
        %v781 = vrot.slane %v720, 1
        %782 = vrot.lane.b32.xlu0 %v781, 96
        %v783 = vpop.permute.xlu0 %782
        %v785 = vrot.slane %v720, 2
        %v786 = vsel %vm589, %v716, %v765
        %v787 = vsel %vm757, %v786, %v768
        %v788 = vsel %vm759, %v787, %v771
        %v789 = vsel %vm589, %v750, %v775
        %v790 = vsel %vm757, %v789, %v779
        %v791 = vsel %vm759, %v790, %v783
        %792 = vrot.lane.b32.xlu0 %v750, 32
        %v793 = vpop.permute.xlu0 %792
        %795 = vrot.lane.b32.xlu0 %v754, 64
        %v796 = vpop.permute.xlu0 %795
        %798 = vrot.lane.b32.xlu0 %v720, 96
        %v799 = vpop.permute.xlu0 %798
        %802 = vrot.lane.b32.xlu0 %v785, 32
        %v803 = vpop.permute.xlu0 %802
        %806 = vrot.lane.b32.xlu0 %v722, 64
        %v807 = vpop.permute.xlu0 %806
        %v809 = vrot.slane %v722, 1
        %810 = vrot.lane.b32.xlu0 %v809, 96
        %v811 = vpop.permute.xlu0 %810
        %v813 = vrot.slane %v722, 2
        %v814 = vsel %vm589, %v718, %v793
        %v815 = vsel %vm757, %v814, %v796
        %v816 = vsel %vm759, %v815, %v799
        %v817 = vsel %vm589, %v781, %v803
        %v818 = vsel %vm757, %v817, %v807
        %v819 = vsel %vm759, %v818, %v811
        %820 = vrot.lane.b32.xlu0 %v781, 32
        %v821 = vpop.permute.xlu0 %820
        %823 = vrot.lane.b32.xlu0 %v785, 64
        %v824 = vpop.permute.xlu0 %823
        %826 = vrot.lane.b32.xlu0 %v722, 96
        %v827 = vpop.permute.xlu0 %826
        %830 = vrot.lane.b32.xlu0 %v813, 32
        %v831 = vpop.permute.xlu0 %830
        %834 = vrot.lane.b32.xlu0 %v724, 64
        %v835 = vpop.permute.xlu0 %834
        %v837 = vrot.slane %v724, 1
        %838 = vrot.lane.b32.xlu0 %v837, 96
        %v839 = vpop.permute.xlu0 %838
        %v841 = vrot.slane %v724, 2
        %v842 = vsel %vm589, %v720, %v821
        %v843 = vsel %vm757, %v842, %v824
        %v844 = vsel %vm759, %v843, %v827
        %v845 = vsel %vm589, %v809, %v831
        %v846 = vsel %vm757, %v845, %v835
        %v847 = vsel %vm759, %v846, %v839
        %848 = vrot.lane.b32.xlu0 %v809, 32
        %v849 = vpop.permute.xlu0 %848
        %851 = vrot.lane.b32.xlu0 %v813, 64
        %v852 = vpop.permute.xlu0 %851
        %854 = vrot.lane.b32.xlu0 %v724, 96
        %v855 = vpop.permute.xlu0 %854
        %858 = vrot.lane.b32.xlu0 %v841, 32
        %v859 = vpop.permute.xlu0 %858
        %862 = vrot.lane.b32.xlu0 %v726, 64
        %v863 = vpop.permute.xlu0 %862
        %v865 = vrot.slane %v726, 1
        %866 = vrot.lane.b32.xlu0 %v865, 96
        %v867 = vpop.permute.xlu0 %866
        %v869 = vrot.slane %v726, 2
        %v870 = vsel %vm589, %v722, %v849
        %v871 = vsel %vm757, %v870, %v852
        %v872 = vsel %vm759, %v871, %v855
        %v873 = vsel %vm589, %v837, %v859
        %v874 = vsel %vm757, %v873, %v863
        %v875 = vsel %vm759, %v874, %v867
        %v878 = vrot.slane %v788, 3
        %v879 = vrot.slane %v791, 3
        %v880 = vrot.slane %v785, 3
        %v886 = vrot.slane %v816, 6
        %v887 = vrot.slane %v819, 6
        %v888 = vrot.slane %v813, 6
        %v894 = vrot.slane %v844, 1
        %v895 = vrot.slane %v847, 1
        %v896 = vrot.slane %v841, 1
        %v902 = vrot.slane %v872, 4
        %v903 = vrot.slane %v875, 4
        %v904 = vrot.slane %v869, 4
        %vm908 = vcmask 1044480
        %v909 = vsel %vm908, %v760, %v878
        %v910 = vsel %vm908, %v763, %v879
        %v911 = vsel %vm908, %v754, %v880
        %vm912 = vcmask 1041408
        %v913 = vsel %vm912, %v878, %v886
        %v914 = vsel %vm912, %v879, %v887
        %v915 = vsel %vm912, %v880, %v888
        %vm916 = vcmask 1046528
        %v917 = vsel %vm916, %v913, %v894
        %v918 = vsel %vm916, %v914, %v895
        %v919 = vsel %vm916, %v915, %v896
        %vm920 = vcmask 1043456
        %v921 = vsel %vm920, %v894, %v902
        %v922 = vsel %vm920, %v895, %v903
        %v923 = vsel %vm920, %v896, %v904
        %v924 = vld [vmem:[%s3] sm:$0xff]
        %v925 = vld [vmem:[%s3 + $0x8] sm:$0xff]
        %v926 = vld [vmem:[%s3 + $0x10] sm:$0xff]
        %v927 = vld [vmem:[%s3 + $0x18] sm:$0xff]
        %v928 = vld [vmem:[%s3 + $0x20] sm:$0xff]
        %v929 = vld [vmem:[%s3 + $0x28] sm:$0xff]
        %v930 = vld [vmem:[%s3 + $0x30] sm:$0xff]
        %v931 = vld [vmem:[%s3 + $0x38] sm:$0xff]
        %v932 = vld [vmem:[%s3 + $0x40] sm:$0xff]
        %v933 = vld [vmem:[%s3 + $0x48] sm:$0xff]
        %v934 = vld [vmem:[%s3 + $0x50] sm:$0xff]
        %v935 = vld [vmem:[%s3 + $0x58] sm:$0xff]
        %v936 = vld [vmem:[%s3 + $0x60] sm:$0xff]
        %v937 = vld [vmem:[%s3 + $0x68] sm:$0xff]
        %v938 = vld [vmem:[%s3 + $0x70] sm:$0xff]
        %v939 = vld [vmem:[%s3 + $0x78] sm:$0xff]
        %v940 = vld [vmem:[%s3 + $0x80] sm:$0xff]
        %v941 = vld [vmem:[%s3 + $0x88] sm:$0xff]
        %v942 = vld [vmem:[%s3 + $0x90] sm:$0xff]
        %v943 = vld [vmem:[%s3 + $0x98] sm:$0xff]
        %v944 = vld [vmem:[%s3 + $0xa0] sm:$0xff]
        %v945 = vld [vmem:[%s3 + $0xa8] sm:$0xff]
        %v946 = vld [vmem:[%s3 + $0xb0] sm:$0xff]
        %v947 = vld [vmem:[%s3 + $0xb8] sm:$0xff]
        %v948 = vld [vmem:[%s3 + $0xc0] sm:$0xff]
        %v949 = vld [vmem:[%s3 + $0xc8] sm:$0xff]
        %v950 = vld [vmem:[%s3 + $0xd0] sm:$0xff]
        %v951 = vld [vmem:[%s3 + $0xd8] sm:$0xff]
        %v952 = vld [vmem:[%s3 + $0xe0] sm:$0xff]
        %v953 = vld [vmem:[%s3 + $0xe8] sm:$0xff]
        %v954 = vld [vmem:[%s3 + $0xf0] sm:$0xff]
        %v955 = vld [vmem:[%s3 + $0xf8] sm:$0xff]
        %v956 = vld [vmem:[%s3 + $0x100] sm:$0xff]
        %v957 = vld [vmem:[%s3 + $0x108] sm:$0xff]
        %v958 = vld [vmem:[%s3 + $0x110] sm:$0xff]
        %v959 = vld [vmem:[%s3 + $0x118] sm:$0xff]
        %v960 = vld [vmem:[%s4] sm:$0x1]
        %v962 = vperm.slane %v960, 0
        %v965 = vsel %vm589, %v911, 0
        %v968 = vsel %vm589, %v919, 0
        %v971 = vsel %vm589, %v923, 0
        %v973 = vsel %vm589, %v904, 0
        %975 = vmatpush.msra.mxu0 %v939
        %976 = vmatpush.msra.mxu0 %v938
        %977 = vmatpush.msra.mxu0 %v937
        %978 = vmatpush.msra.mxu0 %v936
        %979 = vmatpush.msra.mxu0 %v935
        %980 = vmatpush.msra.mxu0 %v934
        %981 = vmatpush.msra.mxu0 %v933
        %982 = vmatpush.msra.mxu0 %v932
        %983 = vmatpush.msra.mxu0 %v931
        %984 = vmatpush.msra.mxu0 %v930
        %985 = vmatpush.msra.mxu0 %v929
        %986 = vmatpush.msra.mxu0 %v928
        %987 = vmatpush.msra.mxu0 %v927
        %988 = vmatpush.msra.mxu0 %v926
        %989 = vmatpush.msra.mxu0 %v925
        %990 = vmatpush.msra.mxu0 %v924
        %991 = vmatmul.f32.gmra.mxu0 %v909
        %v992 = vpop.f32.mrf.mxu0
        %v993 = vadd.f32 %v962, %v992
        %994 = vmatmul.f32.gmra.mxu0 %v917
        %v995 = vpop.f32.mrf.mxu0
        %v996 = vadd.f32 %v962, %v995
        %997 = vmatmul.f32.gmra.mxu0 %v921
        %v998 = vpop.f32.mrf.mxu0
        %v999 = vadd.f32 %v962, %v998
        %1000 = vmatmul.f32.gmra.mxu0 %v902
        %v1001 = vpop.f32.mrf.mxu0
        %1002 = vdwg.mxu0
        %1003 = vmatpush.msra.mxu0 %v955
        %1004 = vmatpush.msra.mxu0 %v954
        %1005 = vmatpush.msra.mxu0 %v953
        %1006 = vmatpush.msra.mxu0 %v952
        %1007 = vmatpush.msra.mxu0 %v951
        %1008 = vmatpush.msra.mxu0 %v950
        %1009 = vmatpush.msra.mxu0 %v949
        %1010 = vmatpush.msra.mxu0 %v948
        %1011 = vmatpush.msra.mxu0 %v947
        %1012 = vmatpush.msra.mxu0 %v946
        %1013 = vmatpush.msra.mxu0 %v945
        %1014 = vmatpush.msra.mxu0 %v944
        %1015 = vmatpush.msra.mxu0 %v943
        %1016 = vmatpush.msra.mxu0 %v942
        %1017 = vmatpush.msra.mxu0 %v941
        %1018 = vmatpush.msra.mxu0 %v940
        %1019 = vmatmul.f32.gmra.mxu0 %v910
        %v1020 = vpop.f32.mrf.mxu0
        %v1021 = vadd.f32 %v993, %v1020
        %1022 = vmatmul.f32.gmra.mxu0 %v918
        %v1023 = vpop.f32.mrf.mxu0
        %v1024 = vadd.f32 %v996, %v1023
        %1025 = vmatmul.f32.gmra.mxu0 %v922
        %v1026 = vpop.f32.mrf.mxu0
        %v1027 = vadd.f32 %v999, %v1026
        %1028 = vmatmul.f32.gmra.mxu0 %v903
        %v1029 = vpop.f32.mrf.mxu0
        %1030 = vdwg.mxu0
        %1031 = vmatpush.msra.mxu0 0.0
        %1032 = vmatpush.msra.mxu0 0.0
        %1033 = vmatpush.msra.mxu0 0.0
        %1034 = vmatpush.msra.mxu0 0.0
        %1035 = vmatpush.msra.mxu0 0.0
        %1036 = vmatpush.msra.mxu0 0.0
        %1037 = vmatpush.msra.mxu0 0.0
        %1038 = vmatpush.msra.mxu0 0.0
        %1039 = vmatpush.msra.mxu0 0.0
        %1040 = vmatpush.msra.mxu0 0.0
        %1041 = vmatpush.msra.mxu0 0.0
        %1042 = vmatpush.msra.mxu0 0.0
        %1043 = vmatpush.msra.mxu0 %v959
        %1044 = vmatpush.msra.mxu0 %v958
        %1045 = vmatpush.msra.mxu0 %v957
        %1046 = vmatpush.msra.mxu0 %v956
        %1047 = vmatmul.f32.gmra.mxu0 %v965
        %v1048 = vpop.f32.mrf.mxu0
        %v1049 = vadd.f32 %v1021, %v1048
        %1050 = vmatmul.f32.gmra.mxu0 %v968
        %v1051 = vpop.f32.mrf.mxu0
        %v1052 = vadd.f32 %v1024, %v1051
        %1053 = vmatmul.f32.gmra.mxu0 %v971
        %v1054 = vpop.f32.mrf.mxu0
        %v1055 = vadd.f32 %v1027, %v1054
        %1056 = vmatmul.f32.gmra.mxu0 %v973
        %v1057 = vpop.f32.mrf.mxu0
        %1058 = vdwg.mxu0
        %v1059 = vmax.f32 %v1049, 0.0
        %v1060 = vmax.f32 %v1052, 0.0
        %v1061 = vmax.f32 %v1055, 0.0
        %v1063 = vrot.slane %v1059, 1
        %v1065 = vmax.f32 %v1059, %v1063
        %v1067 = vrot.slane %v1065, 5
        %v1069 = vmax.f32 %v1065, %v1067
        %v1071 = vrot.slane %v1060, 1
        %v1073 = vmax.f32 %v1059, %v1071
        %v1075 = vrot.slane %v1073, 5
        %v1077 = vmax.f32 %v1065, %v1075
        %v1078 = vmax.f32 %v1060, %v1071
        %v1080 = vrot.slane %v1061, 1
        %v1082 = vmax.f32 %v1060, %v1080
        %v1084 = vrot.slane %v1082, 5
        %v1086 = vmax.f32 %v1078, %v1084
        %v1087 = vmax.f32 %v1061, %v1080
        %v1089 = vrot.slane %v1087, 5
        %v1091 = vmax.f32 %v1078, %v1089
        %v1093 = vrot.slane %v1077, 2
        %1094 = vrot.lane.b32.xlu0 %v1093, 64
        %v1095 = vpop.permute.xlu0 %1094
        %v1098 = vrot.slane %v1086, 2
        %v1101 = vrot.slane %v1091, 4
        %1102 = vrot.lane.b32.xlu0 %v1101, 64
        %v1103 = vpop.permute.xlu0 %1102
        %v1105 = vsel %vm757, %v1069, %v1095
        %v1106 = vsel %vm757, %v1098, %v1103
        %v1107 = vld [vmem:[%s5] sm:$0xff]
        %v1108 = vld [vmem:[%s5 + $0x8] sm:$0xff]
        %v1109 = vld [vmem:[%s5 + $0x10] sm:$0xff]
        %v1110 = vld [vmem:[%s5 + $0x18] sm:$0xff]
        %v1111 = vld [vmem:[%s5 + $0x20] sm:$0xff]
        %v1112 = vld [vmem:[%s5 + $0x28] sm:$0xff]
        %v1113 = vld [vmem:[%s5 + $0x30] sm:$0xff]
        %v1114 = vld [vmem:[%s5 + $0x38] sm:$0xff]
        %v1115 = vld [vmem:[%s5 + $0x40] sm:$0xff]
        %v1116 = vld [vmem:[%s5 + $0x48] sm:$0xff]
        %v1117 = vld [vmem:[%s5 + $0x50] sm:$0xff]
        %v1118 = vld [vmem:[%s5 + $0x58] sm:$0xff]
        %v1119 = vld [vmem:[%s5 + $0x60] sm:$0xff]
        %v1120 = vld [vmem:[%s5 + $0x68] sm:$0xff]
        %v1121 = vld [vmem:[%s5 + $0x70] sm:$0xff]
        %v1122 = vld [vmem:[%s5 + $0x78] sm:$0xff]
        %v1123 = vld [vmem:[%s5 + $0x80] sm:$0xff]
        %v1124 = vld [vmem:[%s5 + $0x88] sm:$0xff]
        %v1125 = vld [vmem:[%s5 + $0x90] sm:$0xff]
        %v1126 = vld [vmem:[%s5 + $0x98] sm:$0xff]
        %v1127 = vld [vmem:[%s5 + $0xa0] sm:$0xff]
        %v1128 = vld [vmem:[%s5 + $0xa8] sm:$0xff]
        %v1129 = vld [vmem:[%s5 + $0xb0] sm:$0xff]
        %v1130 = vld [vmem:[%s5 + $0xb8] sm:$0xff]
        %v1131 = vld [vmem:[%s5 + $0xc0] sm:$0xff]
        %v1132 = vld [vmem:[%s5 + $0xc8] sm:$0xff]
        %v1133 = vld [vmem:[%s5 + $0xd0] sm:$0xff]
        %v1134 = vld [vmem:[%s5 + $0xd8] sm:$0xff]
        %v1135 = vld [vmem:[%s5 + $0xe0] sm:$0xff]
        %v1136 = vld [vmem:[%s5 + $0xe8] sm:$0xff]
        %v1137 = vld [vmem:[%s5 + $0xf0] sm:$0xff]
        %v1138 = vld [vmem:[%s5 + $0xf8] sm:$0xff]
        %v1139 = vld [vmem:[%s6] sm:$0x1]
        %1140 = vmatpush.msra.mxu0 %v1122
        %1141 = vmatpush.msra.mxu0 %v1121
        %1142 = vmatpush.msra.mxu0 %v1120
        %1143 = vmatpush.msra.mxu0 %v1119
        %1144 = vmatpush.msra.mxu0 %v1118
        %1145 = vmatpush.msra.mxu0 %v1117
        %1146 = vmatpush.msra.mxu0 %v1116
        %1147 = vmatpush.msra.mxu0 %v1115
        %1148 = vmatpush.msra.mxu0 %v1114
        %1149 = vmatpush.msra.mxu0 %v1113
        %1150 = vmatpush.msra.mxu0 %v1112
        %1151 = vmatpush.msra.mxu0 %v1111
        %1152 = vmatpush.msra.mxu0 %v1110
        %1153 = vmatpush.msra.mxu0 %v1109
        %1154 = vmatpush.msra.mxu0 %v1108
        %1155 = vmatpush.msra.mxu0 %v1107
        %1156 = vmatmul.f32.gmra.mxu0 %v1105
        %v1157 = vpop.f32.mrf.mxu0
        %v1158 = vadd.f32 %v1139, %v1157
        %1159 = vdwg.mxu0
        %1160 = vmatpush.msra.mxu0 %v1138
        %1161 = vmatpush.msra.mxu0 %v1137
        %1162 = vmatpush.msra.mxu0 %v1136
        %1163 = vmatpush.msra.mxu0 %v1135
        %1164 = vmatpush.msra.mxu0 %v1134
        %1165 = vmatpush.msra.mxu0 %v1133
        %1166 = vmatpush.msra.mxu0 %v1132
        %1167 = vmatpush.msra.mxu0 %v1131
        %1168 = vmatpush.msra.mxu0 %v1130
        %1169 = vmatpush.msra.mxu0 %v1129
        %1170 = vmatpush.msra.mxu0 %v1128
        %1171 = vmatpush.msra.mxu0 %v1127
        %1172 = vmatpush.msra.mxu0 %v1126
        %1173 = vmatpush.msra.mxu0 %v1125
        %1174 = vmatpush.msra.mxu0 %v1124
        %1175 = vmatpush.msra.mxu0 %v1123
        %1176 = vmatmul.f32.gmra.mxu0 %v1106
        %v1177 = vpop.f32.mrf.mxu0
        %v1178 = vadd.f32 %v1158, %v1177
        %1179 = vdwg.mxu0
        %v1180 = vmax.f32 %v1178, 0.0
        %v1181 = vld [vmem:[%s7] sm:$0xff]
        %v1182 = vld [vmem:[%s7 + $0x8] sm:$0xff]
        %v1183 = vld [vmem:[%s7 + $0x10] sm:$0xff]
        %v1184 = vld [vmem:[%s7 + $0x18] sm:$0xff]
        %v1185 = vld [vmem:[%s7 + $0x20] sm:$0xff]
        %v1186 = vld [vmem:[%s7 + $0x28] sm:$0xff]
        %v1187 = vld [vmem:[%s7 + $0x30] sm:$0xff]
        %v1188 = vld [vmem:[%s7 + $0x38] sm:$0xff]
        %v1189 = vld [vmem:[%s8] sm:$0x1]
        %v1191 = vsel %vm757, %v1180, 0
        %1193 = vmatpush.msra.mxu0 0.0
        %1194 = vmatpush.msra.mxu0 0.0
        %1195 = vmatpush.msra.mxu0 0.0
        %1196 = vmatpush.msra.mxu0 0.0
        %1197 = vmatpush.msra.mxu0 0.0
        %1198 = vmatpush.msra.mxu0 0.0
        %1199 = vmatpush.msra.mxu0 0.0
        %1200 = vmatpush.msra.mxu0 0.0
        %1201 = vmatpush.msra.mxu0 %v1188
        %1202 = vmatpush.msra.mxu0 %v1187
        %1203 = vmatpush.msra.mxu0 %v1186
        %1204 = vmatpush.msra.mxu0 %v1185
        %1205 = vmatpush.msra.mxu0 %v1184
        %1206 = vmatpush.msra.mxu0 %v1183
        %1207 = vmatpush.msra.mxu0 %v1182
        %1208 = vmatpush.msra.mxu0 %v1181
        %1209 = vmatmul.f32.gmra.mxu0 %v1191
        %v1210 = vpop.f32.mrf.mxu0
        %v1211 = vadd.f32 %v1189, %v1210
        %1212 = vdwg.mxu0
        %v1213 = vmax.f32 %v1211, 0.0
        %v1214 = vld [vmem:[%s9] sm:$0xff]
        %v1215 = vld [vmem:[%s9 + $0x8] sm:$0xff]
        %v1216 = vld [vmem:[%s9 + $0x10] sm:$0xff]
        %v1217 = vld [vmem:[%s9 + $0x18] sm:$0xff]
        %v1218 = vld [vmem:[%s10] sm:$0x1]
        %v1220 = vsel %vm589, %v1213, 0
        %1222 = vmatpush.msra.mxu0 0.0
        %1223 = vmatpush.msra.mxu0 0.0
        %1224 = vmatpush.msra.mxu0 0.0
        %1225 = vmatpush.msra.mxu0 0.0
        %1226 = vmatpush.msra.mxu0 0.0
        %1227 = vmatpush.msra.mxu0 0.0
        %1228 = vmatpush.msra.mxu0 0.0
        %1229 = vmatpush.msra.mxu0 0.0
        %1230 = vmatpush.msra.mxu0 0.0
        %1231 = vmatpush.msra.mxu0 0.0
        %1232 = vmatpush.msra.mxu0 0.0
        %1233 = vmatpush.msra.mxu0 0.0
        %1234 = vmatpush.msra.mxu0 %v1217
        %1235 = vmatpush.msra.mxu0 %v1216
        %1236 = vmatpush.msra.mxu0 %v1215
        %1237 = vmatpush.msra.mxu0 %v1214
        %1238 = vmatmul.f32.gmra.mxu0 %v1220
        %v1239 = vpop.f32.mrf.mxu0
        %v1240 = vadd.f32 %v1218, %v1239
        %1241 = vdwg.mxu0
        %vm1242 = vcmask 16384
        %1243 = vst.msk [vmem:[%s378] sm:$0x1] %vm1242, %v1240
        %s1244 = sand.u32 %s269, 1
        %s1245 = scalar_lea.sflag [#allocation4], %s1244
        %s1246 = sand.u32 %s269, 1
        %s1247 = scalar_lea.vmem [#allocation3], %s1246
        // Predicated region
        $region65: #{custom_nn_forward.1} parent=63 // pred_check
          %p1248 = pneg %p279
        $region66: #{custom_nn_forward.1} parent=63 // pred_check_branch
          %1250 = sbr.rel (%p1248) target = $region68
        $region67: #{custom_nn_forward.1} parent=63 // pred_region
          %1252 = vsyncadd %s1245, 0
          %s1253 = scalar_lea.hbm %s11, %s25
          %s1255 = sshll.u32 %s1247, 4
          %s1256 = int_to_ptr.vmem [resolvable:$true] %s1255
          %s1257 = sshll.u32 %s1253, 4
          %s1258 = int_to_ptr.hbm [resolvable:$true] %s1257
          %1260 = dma.vmem_to_hbm [thread:$0]  %s1256, 16, %s1258, %s1245
        $region68: #{custom_nn_forward.1} parent=63 // pred_fallthru
          _
      $region64: #{custom_nn_forward.1} parent=5 // pred_fallthru
        _
      %p1261 = scmp.le.s32.totalorder 2, %s20
      // Predicated region
      $region69: #{custom_nn_forward.1} parent=5 // pred_check
        %p1262 = pneg %p1261
      $region70: #{custom_nn_forward.1} parent=5 // pred_check_branch
        %1264 = sbr.rel (%p1262) target = $region72
      $region71: #{custom_nn_forward.1} parent=5 // pred_region
        %s1265 = ssub.s32 %s20, 2
        // Predicated region
        $region73: #{custom_nn_forward.1} parent=71 // pred_check
          %p1266 = pneg %p285
        $region74: #{custom_nn_forward.1} parent=71 // pred_check_branch
          %1268 = sbr.rel (%p1266) target = $region76
        $region75: #{custom_nn_forward.1} parent=71 // pred_region
          %s1269 = sand.u32 %s270, 1
          %s1270 = scalar_lea.sflag [#allocation4], %s1269
          %s1271 = sand.u32 %s270, 1
          %s1272 = scalar_lea.vmem [#allocation3], %s1271
          %1274 = dma.done %s1270, 16
        $region76: #{custom_nn_forward.1} parent=71 // pred_fallthru
          _
      $region72: #{custom_nn_forward.1} parent=5 // pred_fallthru
        _
    $region6: #{custom_nn_forward.1} parent=1 // loop_footer
      %s24 = sadd.s32 1, %s20
    $region7: #{custom_nn_forward.1} parent=1 // loop_footer_branch
      %19 = sbr.rel target = $region3
    $region8: #{custom_nn_forward.1} parent=1 // loop_exit
      _
    %1275 = vsyncpa [#allocation4], 1
    %s1276 = scalar_lea.sflag [#allocation4], 1
    %1277 = vsyncpa %s1276, 1

</llo_original>
